<compile_context>
chip_gen: v6e
topology: v6e:2x2x1
jax: 0.10.0
libtpu: 0.0.40
codegen_flags: <defaults>
</compile_context>

<pallas_src>
import jax
import jax.numpy as jnp
from jax.experimental import pallas as pl
from jax.experimental.pallas import tpu as pltpu

DIMS = 3
OUT = 5
H = 20                      # LAYERS[1]
IN_FEATS = 5 * DIMS         # 15

# (in_features, hidden, out_features) per sub-MLP, in forward order.
_MLP_DIMS = {
    "L":  (DIMS * 2,      (DIMS * 2) * H,      1),
    "U":  (DIMS * 3 + 1,  (DIMS * 3 + 1) * H,  1),
    "R":  (DIMS * 3 + 2,  (DIMS * 3 + 2) * H,  1),
    "B":  (DIMS * 3 + 3,  (DIMS * 3 + 3) * H,  1),
    "S":  (DIMS * 2 + 4,  (DIMS * 2 + 4) * H,  1),
    "FC": (OUT,           OUT * H,             OUT),
}
_ORDER = ("L", "U", "R", "B", "S", "FC")

# Packed-state layout (rows of the (24, TB) VMEM scratch):
#   0..14 : x features, 15 : constant ones (folds b1), 16..20 : t1,t2,t3,t4,t0,
#   21..23: zero padding (sublane-tile alignment).
_STATE_ROWS = 24
_ONES_ROW = IN_FEATS         # 15
_THETA_ROW0 = IN_FEATS + 1   # 16

# W1 column -> state row mapping realizing every torch.cat(...) of the forward.
_COL_MAPS = {
    "L":  list(range(0, 6)),
    "U":  list(range(0, 9)) + [16],
    "R":  list(range(3, 12)) + [16, 17],
    "B":  list(range(6, 15)) + [16, 17, 18],
    "S":  list(range(12, 15)) + list(range(0, 4)) + [16, 17, 18],
    "FC": [20, 16, 17, 18, 19],
}


def _round_up(n, m):
    return ((n + m - 1) // m) * m


def _layer_meta():
    """Static per-layer metadata: (name, row offset, dh, dh padded to 8, dout,
    state row the theta scalar is written to; None for FC)."""
    meta, off = [], 0
    for idx, name in enumerate(_ORDER):
        _, dh, dout = _MLP_DIMS[name]
        dhp = _round_up(dh, 8)
        trow = None if name == "FC" else _THETA_ROW0 + idx
        meta.append((name, off, dh, dhp, dout, trow))
        off += dhp
    return tuple(meta), off


_LAYER_META, _TOTAL_DH = _layer_meta()        # _TOTAL_DH == 1088
_DH_MAX = max(m[3] for m in _LAYER_META)      # 240


def kinenet_kernel(x_ref, w1p_ref, w2p_ref, b2p_ref, out_ref, state_ref):
    tb = x_ref.shape[1]

    # Assemble the packed state for this tile: [x ; ones ; theta slots (zeroed)].
    state_ref[0:IN_FEATS, :] = x_ref[...]
    state_ref[_ONES_ROW:_ONES_ROW + 1, :] = jnp.ones((1, tb), jnp.float32)
    state_ref[_THETA_ROW0:_STATE_ROWS, :] = jnp.zeros(
        (_STATE_ROWS - _THETA_ROW0, tb), jnp.float32)

    # Six sub-MLPs; each = two MXU dots + tanh.  b1 is folded into the packed W1
    # via the ones row; theta scalars feed forward through their state rows.
    for i, (name, off, dh, dhp, dout, trow) in enumerate(_LAYER_META):
        w1 = w1p_ref[off:off + dhp, :]                               # (dhp, 24)
        h = jnp.tanh(jnp.dot(w1, state_ref[...],
                             preferred_element_type=jnp.float32))    # (dhp, tb)
        w2 = w2p_ref[8 * i:8 * (i + 1), 0:dhp]                       # (8, dhp)
        o = jnp.dot(w2, h, preferred_element_type=jnp.float32)       # (8, tb)
        o = o + b2p_ref[8 * i:8 * (i + 1), :]                        # + b2
        if trow is None:                                             # FC head
            out_ref[...] = o[0:OUT, :]
        else:                                                        # theta_i
            state_ref[trow:trow + 1, :] = jnp.tanh(o[0:1, :])


def init_params(key):
    """PyTorch-Linear-style init: U(-1/sqrt(fan_in), 1/sqrt(fan_in)),
    torch-native (out_features, in_features) weight layout."""
    params = {}
    for name in _ORDER:
        din, dh, dout = _MLP_DIMS[name]
        key, k1, k2, k3, k4 = jax.random.split(key, 5)
        lim1 = 1.0 / jnp.sqrt(jnp.float32(din))
        lim2 = 1.0 / jnp.sqrt(jnp.float32(dh))
        W1 = jax.random.uniform(k1, (dh, din), jnp.float32, -lim1, lim1)
        b1 = jax.random.uniform(k2, (dh,), jnp.float32, -lim1, lim1)
        W2 = jax.random.uniform(k3, (dout, dh), jnp.float32, -lim2, lim2)
        b2 = jax.random.uniform(k4, (dout,), jnp.float32, -lim2, lim2)
        params[name] = (W1, b1, W2, b2)
    return params


def pack_params(params):
    """Pack the 24 torch tensors into 3 arrays aligned with the state layout."""
    w1_blocks, w2_blocks, b2_blocks = [], [], []
    for name, off, dh, dhp, dout, trow in _LAYER_META:
        W1, b1, W2, b2 = params[name]
        cols = jnp.asarray(_COL_MAPS[name], jnp.int32)

        blk1 = jnp.zeros((dhp, _STATE_ROWS), jnp.float32)
        blk1 = blk1.at[:dh, cols].set(W1)          # permute columns to state rows
        blk1 = blk1.at[:dh, _ONES_ROW].set(b1)     # fold b1 into the ones column
        w1_blocks.append(blk1)

        blk2 = jnp.zeros((8, _DH_MAX), jnp.float32)
        blk2 = blk2.at[:dout, :dh].set(W2)
        w2_blocks.append(blk2)

        blk3 = jnp.zeros((8, 1), jnp.float32)
        blk3 = blk3.at[:dout, 0].set(b2)
        b2_blocks.append(blk3)

    return (jnp.concatenate(w1_blocks, axis=0),    # (1088, 24)
            jnp.concatenate(w2_blocks, axis=0),    # (48, 240)
            jnp.concatenate(b2_blocks, axis=0))    # (48, 1)


def kinenet_forward(x, params, *, tile_b=2048):
    """x: (B, 15) float32  ->  (B, 5) float32."""
    B = x.shape[0]
    assert x.shape[1] == IN_FEATS

    W1P, W2P, B2P = pack_params(params)

    B128 = _round_up(B, 128)
    tile_b = max(128, min(_round_up(tile_b, 128), B128))
    # Prefer >= 2 tiles when the batch allows it so both TensorCores get work on
    # megacore parts (v7x); costs only one extra ~0.35us step on single-core chips.
    if B128 // tile_b < 2 and B128 >= 256:
        tile_b = _round_up(pl.cdiv(B128, 2), 128)
    n_tiles = pl.cdiv(B128, tile_b)
    B_pad = n_tiles * tile_b

    # Batch-on-lanes layout; padded columns produce garbage sliced away at the end.
    xT = jnp.zeros((IN_FEATS, B_pad), jnp.float32).at[:, :B].set(x.T)
    # TODO(synk): for very large B, fold this HBM transpose into the kernel (idle XLU).

    x_spec = pl.BlockSpec((IN_FEATS, tile_b), lambda i: (0, i))
    w1_spec = pl.BlockSpec(W1P.shape, lambda i: (0, 0))
    w2_spec = pl.BlockSpec(W2P.shape, lambda i: (0, 0))
    b2_spec = pl.BlockSpec(B2P.shape, lambda i: (0, 0))
    out_spec = pl.BlockSpec((OUT, tile_b), lambda i: (0, i))

    weight_bytes = 4 * (int(W1P.size) + int(W2P.size) + int(B2P.size))
    cost = pl.CostEstimate(
        flops=2 * _TOTAL_DH * (_STATE_ROWS + 8) * B_pad,
        transcendentals=(_TOTAL_DH + len(_ORDER)) * B_pad,
        bytes_accessed=(IN_FEATS + OUT) * 4 * B_pad + weight_bytes,
    )

    outT = pl.pallas_call(
        kinenet_kernel,
        out_shape=jax.ShapeDtypeStruct((OUT, B_pad), jnp.float32),
        grid_spec=pltpu.PrefetchScalarGridSpec(
            num_scalar_prefetch=0,
            grid=(n_tiles,),
            in_specs=[x_spec, w1_spec, w2_spec, b2_spec],
            out_specs=out_spec,
            scratch_shapes=[pltpu.VMEM((_STATE_ROWS, tile_b), jnp.float32)],
        ),
        compiler_params=pltpu.CompilerParams(
            dimension_semantics=("parallel",),
            vmem_limit_bytes=32 * 1024 * 1024,
        ),
        cost_estimate=cost,
    )(xT, W1P, W2P, B2P)

    return outT.T[:B]


def kinenet_ref(x, params):
    """Pure-JAX reference mirroring the PyTorch forward exactly (row-major)."""
    def seq(inp, W1, b1, W2, b2, tanh_out=True):
        h = jnp.tanh(inp @ W1.T + b1)
        o = h @ W2.T + b2
        return jnp.tanh(o) if tanh_out else o

    t = seq(x[:, :6], *params["L"])
    t = jnp.concatenate([t, seq(jnp.concatenate([x[:, :9], t], 1), *params["U"])], 1)
    t = jnp.concatenate([t, seq(jnp.concatenate([x[:, 3:12], t], 1), *params["R"])], 1)
    t = jnp.concatenate([t, seq(jnp.concatenate([x[:, 6:15], t], 1), *params["B"])], 1)
    t = jnp.concatenate(
        [seq(jnp.concatenate([x[:, 12:], x[:, :4], t[:, :3]], 1), *params["S"]), t], 1)
    return seq(t, *params["FC"], tanh_out=False)


if __name__ == "__main__":
    key = jax.random.PRNGKey(0)
    kp, kx = jax.random.split(key)
    params = init_params(kp)

    B = 8
    x = jax.random.normal(kx, (B, IN_FEATS), jnp.float32)  # [batch, joints*3]

    out = jax.block_until_ready(kinenet_forward(x, params))
    ref = kinenet_ref(x, params)

    assert out.shape == (B, OUT)
    err = float(jnp.max(jnp.abs(out - ref)))
    assert jnp.allclose(out, ref, atol=2e-3, rtol=2e-3), f"max abs err {err}"
    print("KERNEL_OK")
</pallas_src>

<mosaic_0001>
module attributes {stable_mosaic.version = 11 : i64} {
  func.func @kinenet_kernel(%arg0: i32, %arg1: memref<15x128xf32, #tpu.memory_space<vmem>>, %arg2: memref<1088x24xf32, #tpu.memory_space<vmem>>, %arg3: memref<48x240xf32, #tpu.memory_space<vmem>>, %arg4: memref<48x1xf32, #tpu.memory_space<vmem>>, %arg5: memref<5x128xf32, #tpu.memory_space<vmem>>, %arg6: memref<24x128xf32, #tpu.memory_space<vmem>>) attributes {dimension_semantics = [#tpu.dimension_semantics<parallel>], iteration_bounds = array<i64: 1>, scalar_prefetch = 0 : i64, scratch_operands = 1 : i64, tpu.core_type = #tpu.core_type<tc>, window_params = [{transform_indices = @transform_0, window_bounds = array<i64: 15, 128>}, {pipeline_mode = #tpu.pipeline_mode<synchronous>, transform_indices = @transform_1, window_bounds = array<i64: 1088, 24>}, {pipeline_mode = #tpu.pipeline_mode<synchronous>, transform_indices = @transform_2, window_bounds = array<i64: 48, 240>}, {pipeline_mode = #tpu.pipeline_mode<synchronous>, transform_indices = @transform_3, window_bounds = array<i64: 48, 1>}, {transform_indices = @transform_4, window_bounds = array<i64: 5, 128>}]} {
    %c0 = arith.constant 0 : index
    %c0_0 = arith.constant 0 : index
    %0 = vector.load %arg1[%c0, %c0_0] : memref<15x128xf32, #tpu.memory_space<vmem>>, vector<15x128xf32>
    %c0_1 = arith.constant 0 : index
    %c0_2 = arith.constant 0 : index
    %1 = vector.load %arg6[%c0_1, %c0_2] : memref<24x128xf32, #tpu.memory_space<vmem>>, vector<15x128xf32>
    tpu.vector_store %arg6[%c0_1, %c0_2], %0 {strides = array<i32>} : memref<24x128xf32, #tpu.memory_space<vmem>>, vector<15x128xf32>,
    %cst = arith.constant 1.000000e+00 : f32
    %2 = vector.broadcast %cst : f32 to vector<1x128xf32>
    %c15 = arith.constant 15 : index
    %c0_3 = arith.constant 0 : index
    %3 = vector.load %arg6[%c15, %c0_3] : memref<24x128xf32, #tpu.memory_space<vmem>>, vector<1x128xf32>
    tpu.vector_store %arg6[%c15, %c0_3], %2 {strides = array<i32>} : memref<24x128xf32, #tpu.memory_space<vmem>>, vector<1x128xf32>,
    %cst_4 = arith.constant 0.000000e+00 : f32
    %4 = vector.broadcast %cst_4 : f32 to vector<8x128xf32>
    %c16 = arith.constant 16 : index
    %c0_5 = arith.constant 0 : index
    %5 = vector.load %arg6[%c16, %c0_5] : memref<24x128xf32, #tpu.memory_space<vmem>>, vector<8x128xf32>
    tpu.vector_store %arg6[%c16, %c0_5], %4 {strides = array<i32>} : memref<24x128xf32, #tpu.memory_space<vmem>>, vector<8x128xf32>,
    %c0_6 = arith.constant 0 : index
    %c0_7 = arith.constant 0 : index
    %6 = vector.load %arg2[%c0_6, %c0_7] : memref<1088x24xf32, #tpu.memory_space<vmem>>, vector<120x24xf32>
    %c0_8 = arith.constant 0 : index
    %c0_9 = arith.constant 0 : index
    %7 = vector.load %arg6[%c0_8, %c0_9] : memref<24x128xf32, #tpu.memory_space<vmem>>, vector<24x128xf32>
    %cst_10 = arith.constant dense<0.000000e+00> : vector<120x128xf32>
    %8 = tpu.matmul %6, %7, %cst_10 {dimension_numbers = #tpu.dot_dimension_numbers<[1], [0], [0], [1], [0, 0, 1, 1], [], []>} : vector<120x24xf32>, vector<24x128xf32>, vector<120x128xf32> -> vector<120x128xf32>
    %9 = math.tanh %8 : vector<120x128xf32>
    %c0_11 = arith.constant 0 : index
    %c0_12 = arith.constant 0 : index
    %10 = vector.load %arg3[%c0_11, %c0_12] : memref<48x240xf32, #tpu.memory_space<vmem>>, vector<8x120xf32>
    %cst_13 = arith.constant dense<0.000000e+00> : vector<8x128xf32>
    %11 = tpu.matmul %10, %9, %cst_13 {dimension_numbers = #tpu.dot_dimension_numbers<[1], [0], [0], [1], [0, 0, 1, 1], [], []>} : vector<8x120xf32>, vector<120x128xf32>, vector<8x128xf32> -> vector<8x128xf32>
    %c0_14 = arith.constant 0 : index
    %c0_15 = arith.constant 0 : index
    %12 = vector.load %arg4[%c0_14, %c0_15] : memref<48x1xf32, #tpu.memory_space<vmem>>, vector<8x1xf32>
    %13 = vector.broadcast %12 : vector<8x1xf32> to vector<8x128xf32>
    %14 = arith.addf %11, %13 : vector<8x128xf32>
    %15 = vector.extract_strided_slice %14 {offsets = [0, 0], sizes = [1, 128], strides = [1, 1]} : vector<8x128xf32> to vector<1x128xf32>
    %16 = math.tanh %15 : vector<1x128xf32>
    %c16_16 = arith.constant 16 : index
    %c0_17 = arith.constant 0 : index
    %17 = vector.load %arg6[%c16_16, %c0_17] : memref<24x128xf32, #tpu.memory_space<vmem>>, vector<1x128xf32>
    tpu.vector_store %arg6[%c16_16, %c0_17], %16 {strides = array<i32>} : memref<24x128xf32, #tpu.memory_space<vmem>>, vector<1x128xf32>,
    %c120 = arith.constant 120 : index
    %c0_18 = arith.constant 0 : index
    %18 = vector.load %arg2[%c120, %c0_18] : memref<1088x24xf32, #tpu.memory_space<vmem>>, vector<200x24xf32>
    %c0_19 = arith.constant 0 : index
    %c0_20 = arith.constant 0 : index
    %19 = vector.load %arg6[%c0_19, %c0_20] : memref<24x128xf32, #tpu.memory_space<vmem>>, vector<24x128xf32>
    %cst_21 = arith.constant dense<0.000000e+00> : vector<200x128xf32>
    %20 = tpu.matmul %18, %19, %cst_21 {dimension_numbers = #tpu.dot_dimension_numbers<[1], [0], [0], [1], [0, 0, 1, 1], [], []>} : vector<200x24xf32>, vector<24x128xf32>, vector<200x128xf32> -> vector<200x128xf32>
    %21 = math.tanh %20 : vector<200x128xf32>
    %c8 = arith.constant 8 : index
    %c0_22 = arith.constant 0 : index
    %22 = vector.load %arg3[%c8, %c0_22] : memref<48x240xf32, #tpu.memory_space<vmem>>, vector<8x200xf32>
    %cst_23 = arith.constant dense<0.000000e+00> : vector<8x128xf32>
    %23 = tpu.matmul %22, %21, %cst_23 {dimension_numbers = #tpu.dot_dimension_numbers<[1], [0], [0], [1], [0, 0, 1, 1], [], []>} : vector<8x200xf32>, vector<200x128xf32>, vector<8x128xf32> -> vector<8x128xf32>
    %c8_24 = arith.constant 8 : index
    %c0_25 = arith.constant 0 : index
    %24 = vector.load %arg4[%c8_24, %c0_25] : memref<48x1xf32, #tpu.memory_space<vmem>>, vector<8x1xf32>
    %25 = vector.broadcast %24 : vector<8x1xf32> to vector<8x128xf32>
    %26 = arith.addf %23, %25 : vector<8x128xf32>
    %27 = vector.extract_strided_slice %26 {offsets = [0, 0], sizes = [1, 128], strides = [1, 1]} : vector<8x128xf32> to vector<1x128xf32>
    %28 = math.tanh %27 : vector<1x128xf32>
    %c17 = arith.constant 17 : index
    %c0_26 = arith.constant 0 : index
    %29 = vector.load %arg6[%c17, %c0_26] : memref<24x128xf32, #tpu.memory_space<vmem>>, vector<1x128xf32>
    tpu.vector_store %arg6[%c17, %c0_26], %28 {strides = array<i32>} : memref<24x128xf32, #tpu.memory_space<vmem>>, vector<1x128xf32>,
    %c320 = arith.constant 320 : index
    %c0_27 = arith.constant 0 : index
    %30 = vector.load %arg2[%c320, %c0_27] : memref<1088x24xf32, #tpu.memory_space<vmem>>, vector<224x24xf32>
    %c0_28 = arith.constant 0 : index
    %c0_29 = arith.constant 0 : index
    %31 = vector.load %arg6[%c0_28, %c0_29] : memref<24x128xf32, #tpu.memory_space<vmem>>, vector<24x128xf32>
    %cst_30 = arith.constant dense<0.000000e+00> : vector<224x128xf32>
    %32 = tpu.matmul %30, %31, %cst_30 {dimension_numbers = #tpu.dot_dimension_numbers<[1], [0], [0], [1], [0, 0, 1, 1], [], []>} : vector<224x24xf32>, vector<24x128xf32>, vector<224x128xf32> -> vector<224x128xf32>
    %33 = math.tanh %32 : vector<224x128xf32>
    %c16_31 = arith.constant 16 : index
    %c0_32 = arith.constant 0 : index
    %34 = vector.load %arg3[%c16_31, %c0_32] : memref<48x240xf32, #tpu.memory_space<vmem>>, vector<8x224xf32>
    %cst_33 = arith.constant dense<0.000000e+00> : vector<8x128xf32>
    %35 = tpu.matmul %34, %33, %cst_33 {dimension_numbers = #tpu.dot_dimension_numbers<[1], [0], [0], [1], [0, 0, 1, 1], [], []>} : vector<8x224xf32>, vector<224x128xf32>, vector<8x128xf32> -> vector<8x128xf32>
    %c16_34 = arith.constant 16 : index
    %c0_35 = arith.constant 0 : index
    %36 = vector.load %arg4[%c16_34, %c0_35] : memref<48x1xf32, #tpu.memory_space<vmem>>, vector<8x1xf32>
    %37 = vector.broadcast %36 : vector<8x1xf32> to vector<8x128xf32>
    %38 = arith.addf %35, %37 : vector<8x128xf32>
    %39 = vector.extract_strided_slice %38 {offsets = [0, 0], sizes = [1, 128], strides = [1, 1]} : vector<8x128xf32> to vector<1x128xf32>
    %40 = math.tanh %39 : vector<1x128xf32>
    %c18 = arith.constant 18 : index
    %c0_36 = arith.constant 0 : index
    %41 = vector.load %arg6[%c18, %c0_36] : memref<24x128xf32, #tpu.memory_space<vmem>>, vector<1x128xf32>
    tpu.vector_store %arg6[%c18, %c0_36], %40 {strides = array<i32>} : memref<24x128xf32, #tpu.memory_space<vmem>>, vector<1x128xf32>,
    %c544 = arith.constant 544 : index
    %c0_37 = arith.constant 0 : index
    %42 = vector.load %arg2[%c544, %c0_37] : memref<1088x24xf32, #tpu.memory_space<vmem>>, vector<240x24xf32>
    %c0_38 = arith.constant 0 : index
    %c0_39 = arith.constant 0 : index
    %43 = vector.load %arg6[%c0_38, %c0_39] : memref<24x128xf32, #tpu.memory_space<vmem>>, vector<24x128xf32>
    %cst_40 = arith.constant dense<0.000000e+00> : vector<240x128xf32>
    %44 = tpu.matmul %42, %43, %cst_40 {dimension_numbers = #tpu.dot_dimension_numbers<[1], [0], [0], [1], [0, 0, 1, 1], [], []>} : vector<240x24xf32>, vector<24x128xf32>, vector<240x128xf32> -> vector<240x128xf32>
    %45 = math.tanh %44 : vector<240x128xf32>
    %c24 = arith.constant 24 : index
    %c0_41 = arith.constant 0 : index
    %46 = vector.load %arg3[%c24, %c0_41] : memref<48x240xf32, #tpu.memory_space<vmem>>, vector<8x240xf32>
    %cst_42 = arith.constant dense<0.000000e+00> : vector<8x128xf32>
    %47 = tpu.matmul %46, %45, %cst_42 {dimension_numbers = #tpu.dot_dimension_numbers<[1], [0], [0], [1], [0, 0, 1, 1], [], []>} : vector<8x240xf32>, vector<240x128xf32>, vector<8x128xf32> -> vector<8x128xf32>
    %c24_43 = arith.constant 24 : index
    %c0_44 = arith.constant 0 : index
    %48 = vector.load %arg4[%c24_43, %c0_44] : memref<48x1xf32, #tpu.memory_space<vmem>>, vector<8x1xf32>
    %49 = vector.broadcast %48 : vector<8x1xf32> to vector<8x128xf32>
    %50 = arith.addf %47, %49 : vector<8x128xf32>
    %51 = vector.extract_strided_slice %50 {offsets = [0, 0], sizes = [1, 128], strides = [1, 1]} : vector<8x128xf32> to vector<1x128xf32>
    %52 = math.tanh %51 : vector<1x128xf32>
    %c19 = arith.constant 19 : index
    %c0_45 = arith.constant 0 : index
    %53 = vector.load %arg6[%c19, %c0_45] : memref<24x128xf32, #tpu.memory_space<vmem>>, vector<1x128xf32>
    tpu.vector_store %arg6[%c19, %c0_45], %52 {strides = array<i32>} : memref<24x128xf32, #tpu.memory_space<vmem>>, vector<1x128xf32>,
    %c784 = arith.constant 784 : index
    %c0_46 = arith.constant 0 : index
    %54 = vector.load %arg2[%c784, %c0_46] : memref<1088x24xf32, #tpu.memory_space<vmem>>, vector<200x24xf32>
    %c0_47 = arith.constant 0 : index
    %c0_48 = arith.constant 0 : index
    %55 = vector.load %arg6[%c0_47, %c0_48] : memref<24x128xf32, #tpu.memory_space<vmem>>, vector<24x128xf32>
    %cst_49 = arith.constant dense<0.000000e+00> : vector<200x128xf32>
    %56 = tpu.matmul %54, %55, %cst_49 {dimension_numbers = #tpu.dot_dimension_numbers<[1], [0], [0], [1], [0, 0, 1, 1], [], []>} : vector<200x24xf32>, vector<24x128xf32>, vector<200x128xf32> -> vector<200x128xf32>
    %57 = math.tanh %56 : vector<200x128xf32>
    %c32 = arith.constant 32 : index
    %c0_50 = arith.constant 0 : index
    %58 = vector.load %arg3[%c32, %c0_50] : memref<48x240xf32, #tpu.memory_space<vmem>>, vector<8x200xf32>
    %cst_51 = arith.constant dense<0.000000e+00> : vector<8x128xf32>
    %59 = tpu.matmul %58, %57, %cst_51 {dimension_numbers = #tpu.dot_dimension_numbers<[1], [0], [0], [1], [0, 0, 1, 1], [], []>} : vector<8x200xf32>, vector<200x128xf32>, vector<8x128xf32> -> vector<8x128xf32>
    %c32_52 = arith.constant 32 : index
    %c0_53 = arith.constant 0 : index
    %60 = vector.load %arg4[%c32_52, %c0_53] : memref<48x1xf32, #tpu.memory_space<vmem>>, vector<8x1xf32>
    %61 = vector.broadcast %60 : vector<8x1xf32> to vector<8x128xf32>
    %62 = arith.addf %59, %61 : vector<8x128xf32>
    %63 = vector.extract_strided_slice %62 {offsets = [0, 0], sizes = [1, 128], strides = [1, 1]} : vector<8x128xf32> to vector<1x128xf32>
    %64 = math.tanh %63 : vector<1x128xf32>
    %c20 = arith.constant 20 : index
    %c0_54 = arith.constant 0 : index
    %65 = vector.load %arg6[%c20, %c0_54] : memref<24x128xf32, #tpu.memory_space<vmem>>, vector<1x128xf32>
    tpu.vector_store %arg6[%c20, %c0_54], %64 {strides = array<i32>} : memref<24x128xf32, #tpu.memory_space<vmem>>, vector<1x128xf32>,
    %c984 = arith.constant 984 : index
    %c0_55 = arith.constant 0 : index
    %66 = vector.load %arg2[%c984, %c0_55] : memref<1088x24xf32, #tpu.memory_space<vmem>>, vector<104x24xf32>
    %c0_56 = arith.constant 0 : index
    %c0_57 = arith.constant 0 : index
    %67 = vector.load %arg6[%c0_56, %c0_57] : memref<24x128xf32, #tpu.memory_space<vmem>>, vector<24x128xf32>
    %cst_58 = arith.constant dense<0.000000e+00> : vector<104x128xf32>
    %68 = tpu.matmul %66, %67, %cst_58 {dimension_numbers = #tpu.dot_dimension_numbers<[1], [0], [0], [1], [0, 0, 1, 1], [], []>} : vector<104x24xf32>, vector<24x128xf32>, vector<104x128xf32> -> vector<104x128xf32>
    %69 = math.tanh %68 : vector<104x128xf32>
    %c40 = arith.constant 40 : index
    %c0_59 = arith.constant 0 : index
    %70 = vector.load %arg3[%c40, %c0_59] : memref<48x240xf32, #tpu.memory_space<vmem>>, vector<8x104xf32>
    %cst_60 = arith.constant dense<0.000000e+00> : vector<8x128xf32>
    %71 = tpu.matmul %70, %69, %cst_60 {dimension_numbers = #tpu.dot_dimension_numbers<[1], [0], [0], [1], [0, 0, 1, 1], [], []>} : vector<8x104xf32>, vector<104x128xf32>, vector<8x128xf32> -> vector<8x128xf32>
    %c40_61 = arith.constant 40 : index
    %c0_62 = arith.constant 0 : index
    %72 = vector.load %arg4[%c40_61, %c0_62] : memref<48x1xf32, #tpu.memory_space<vmem>>, vector<8x1xf32>
    %73 = vector.broadcast %72 : vector<8x1xf32> to vector<8x128xf32>
    %74 = arith.addf %71, %73 : vector<8x128xf32>
    %75 = vector.extract_strided_slice %74 {offsets = [0, 0], sizes = [5, 128], strides = [1, 1]} : vector<8x128xf32> to vector<5x128xf32>
    %c0_63 = arith.constant 0 : index
    %c0_64 = arith.constant 0 : index
    %76 = vector.load %arg5[%c0_63, %c0_64] : memref<5x128xf32, #tpu.memory_space<vmem>>, vector<5x128xf32>
    tpu.vector_store %arg5[%c0_63, %c0_64], %75 {strides = array<i32>} : memref<5x128xf32, #tpu.memory_space<vmem>>, vector<5x128xf32>,
    return
  }
  func.func @transform_0(%arg0: i32) -> (i32, i32) {
    %c0_i32 = arith.constant 0 : i32
    %c0_i32_0 = arith.constant 0 : i32
    return %c0_i32, %arg0 : i32, i32
  }
  func.func @transform_1(%arg0: i32) -> (i32, i32) {
    %c0_i32 = arith.constant 0 : i32
    %c0_i32_0 = arith.constant 0 : i32
    %c0_i32_1 = arith.constant 0 : i32
    return %c0_i32, %c0_i32_0 : i32, i32
  }
  func.func @transform_2(%arg0: i32) -> (i32, i32) {
    %c0_i32 = arith.constant 0 : i32
    %c0_i32_0 = arith.constant 0 : i32
    %c0_i32_1 = arith.constant 0 : i32
    return %c0_i32, %c0_i32_0 : i32, i32
  }
  func.func @transform_3(%arg0: i32) -> (i32, i32) {
    %c0_i32 = arith.constant 0 : i32
    %c0_i32_0 = arith.constant 0 : i32
    %c0_i32_1 = arith.constant 0 : i32
    return %c0_i32, %c0_i32_0 : i32, i32
  }
  func.func @transform_4(%arg0: i32) -> (i32, i32) {
    %c0_i32 = arith.constant 0 : i32
    %c0_i32_0 = arith.constant 0 : i32
    return %c0_i32, %arg0 : i32, i32
  }
}

</mosaic_0001>

<llo_original>
// kernel: tpu_custom_call.1
$region0: #{tpu_custom_call.1}
  #allocation0 [shape = 'u32[]', space=smem, size = 0x4, offset = 0x4, fixed_abs, tag = 'smem constant byte address 0x4 - core index']
  #allocation1 [shape = 'u32[144,128]{1,0:T(1,128)}', space=vmem, size = 0x12000, scoped, tag = 'internal scratch']
  #allocation2 [shape = 'f32[24,128]{1,0:T(8,128)}', space=vmem, size = 0x3000, scoped, tag = 'scratch operand']
  %s0 = inlined_call_operand.vmem [shape: f32[15,128], index: 0, kind: input, shape index: {}]
  %s1 = inlined_call_operand.vmem [shape: f32[1088,24], index: 1, kind: input, shape index: {}]
  %s2 = inlined_call_operand.vmem [shape: f32[48,240], index: 2, kind: input, shape index: {}]
  %s3 = inlined_call_operand.vmem [shape: f32[48,1], index: 3, kind: input, shape index: {}]
  %s4 = inlined_call_operand.hbm [shape: f32[5,128], index: 4, kind: output, shape index: {}]
  %s5 = sld [smem:[#allocation0]]
  $region26: #{tpu_custom_call.1} parent=0
    _
  %s7 = ssub.s32 1, %s5
  %s8 = scalar_select 0, %s7, %s5
  $region1: #{tpu_custom_call.1} parent=0
    #allocation3 [shape = 'u8[4096]{0}', space=vmem, size = 0x1000, scoped, tag = 'output window, operand 0, single buffered']
    #allocation4 [shape = 's32[1]{0}', space=sflag, size = 0x4, scoped, tag = 'scoped memory for tpu_custom_call.1']
    %9 = vsyncpa [#allocation4], 0
    // Predicated region
    $region2: #{tpu_custom_call.1} parent=1 // pred_check
      _
    $region3: #{tpu_custom_call.1} parent=1 // pred_check_branch
      %11 = sbr.rel (0) target = $region5
    $region4: #{tpu_custom_call.1} parent=1 // pred_region
      _
    $region5: #{tpu_custom_call.1} parent=1 // pred_fallthru
      _
    // Predicated region
    $region6: #{tpu_custom_call.1} parent=1 // pred_check
      _
    $region7: #{tpu_custom_call.1} parent=1 // pred_check_branch
      %13 = sbr.rel (0) target = $region9
    $region8: #{tpu_custom_call.1} parent=1 // pred_region
      _
    $region9: #{tpu_custom_call.1} parent=1 // pred_fallthru
      _
    // Predicated region
    $region10: #{tpu_custom_call.1} parent=1 // pred_check
      _
    $region11: #{tpu_custom_call.1} parent=1 // pred_check_branch
      %15 = sbr.rel (0) target = $region13
    $region12: #{tpu_custom_call.1} parent=1 // pred_region
      _
    $region13: #{tpu_custom_call.1} parent=1 // pred_fallthru
      _
    // Predicated region
    $region14: #{tpu_custom_call.1} parent=1 // pred_check
      _
    $region15: #{tpu_custom_call.1} parent=1 // pred_check_branch
      %17 = sbr.rel (0) target = $region17
    $region16: #{tpu_custom_call.1} parent=1 // pred_region
      _
    $region17: #{tpu_custom_call.1} parent=1 // pred_fallthru
      _
    %v18 = vld [vmem:[%s0] sm:$0xff]
    %v19 = vld [vmem:[%s0 + $0x8] sm:$0x7f]
    %20 = vst [vmem:[#allocation2] sm:$0xff] %v18
    %21 = vst [vmem:[#allocation2 + $0x8] sm:$0x7f] %v19
    %22 = vst [vmem:[#allocation2 + $0xf] sm:$0x1] 1.0
    %23 = vst [vmem:[#allocation2 + $0x10] sm:$0xff] 0.0
    %v24 = vld [vmem:[%s1] sm:$0xff]
    %v25 = vld [vmem:[%s1 + $0x8] sm:$0xff]
    %v26 = vld [vmem:[%s1 + $0x10] sm:$0xff]
    %v27 = vld [vmem:[%s1 + $0x18] sm:$0xff]
    %v28 = vld [vmem:[%s1 + $0x20] sm:$0xff]
    %v29 = vld [vmem:[%s1 + $0x28] sm:$0xff]
    %v30 = vld [vmem:[%s1 + $0x30] sm:$0xff]
    %v31 = vld [vmem:[%s1 + $0x38] sm:$0xff]
    %v32 = vld [vmem:[%s1 + $0x40] sm:$0xff]
    %v33 = vld [vmem:[%s1 + $0x48] sm:$0xff]
    %v34 = vld [vmem:[%s1 + $0x50] sm:$0xff]
    %v35 = vld [vmem:[%s1 + $0x58] sm:$0xff]
    %v36 = vld [vmem:[%s1 + $0x60] sm:$0xff]
    %v37 = vld [vmem:[%s1 + $0x68] sm:$0xff]
    %v38 = vld [vmem:[%s1 + $0x70] sm:$0xff]
    %v39 = vld [vmem:[#allocation2] sm:$0xff]
    %v40 = vld [vmem:[#allocation2 + $0x8] sm:$0xff]
    %v41 = vld [vmem:[#allocation2 + $0x10] sm:$0xff]
    %vm42 = vcmask 195584
    %v44 = vsel %vm42, %v24, 0
    %v47 = vsel %vm42, %v25, 0
    %v50 = vsel %vm42, %v26, 0
    %v53 = vsel %vm42, %v27, 0
    %v56 = vsel %vm42, %v28, 0
    %v59 = vsel %vm42, %v29, 0
    %v62 = vsel %vm42, %v30, 0
    %v65 = vsel %vm42, %v31, 0
    %v68 = vsel %vm42, %v32, 0
    %v71 = vsel %vm42, %v33, 0
    %v74 = vsel %vm42, %v34, 0
    %v77 = vsel %vm42, %v35, 0
    %v80 = vsel %vm42, %v36, 0
    %v83 = vsel %vm42, %v37, 0
    %v86 = vsel %vm42, %v38, 0
    %88 = vmatprep.subr.mxu0 0.0
    %89 = vmatpush1.msra.mxu0 0.0
    %90 = vmatprep.subr.mxu0 0.0
    %91 = vmatpush1.msra.mxu0 0.0
    %92 = vmatprep.subr.mxu0 0.0
    %93 = vmatpush1.msra.mxu0 0.0
    %94 = vmatprep.subr.mxu0 0.0
    %95 = vmatpush1.msra.mxu0 0.0
    %96 = vmatprep.subr.mxu0 0.0
    %97 = vmatpush1.msra.mxu0 0.0
    %98 = vmatprep.subr.mxu0 0.0
    %99 = vmatpush1.msra.mxu0 0.0
    %100 = vmatprep.subr.mxu0 0.0
    %101 = vmatpush1.msra.mxu0 0.0
    %102 = vmatprep.subr.mxu0 0.0
    %103 = vmatpush1.msra.mxu0 0.0
    %104 = vmatprep.subr.mxu0 0.0
    %105 = vmatpush1.msra.mxu0 0.0
    %106 = vmatprep.subr.mxu0 0.0
    %107 = vmatpush1.msra.mxu0 0.0
    %108 = vmatprep.subr.mxu0 0.0
    %109 = vmatpush1.msra.mxu0 0.0
    %110 = vmatprep.subr.mxu0 0.0
    %111 = vmatpush1.msra.mxu0 0.0
    %112 = vmatprep.subr.mxu0 0.0
    %113 = vmatpush1.msra.mxu0 0.0
    %114 = vmatprep.subr.mxu0 0.0
    %115 = vmatpush1.msra.mxu0 %v41
    %116 = vmatprep.subr.mxu0 0.0
    %117 = vmatpush1.msra.mxu0 %v40
    %118 = vmatprep.subr.mxu0 0.0
    %119 = vmatpush1.msra.mxu0 %v39
    %120 = vmatprep.subr.mxu0 0.0
    %121 = vmatpush2.msra.mxu0 0.0
    %122 = vmatprep.subr.mxu0 0.0
    %123 = vmatpush2.msra.mxu0 0.0
    %124 = vmatprep.subr.mxu0 0.0
    %125 = vmatpush2.msra.mxu0 0.0
    %126 = vmatprep.subr.mxu0 0.0
    %127 = vmatpush2.msra.mxu0 0.0
    %128 = vmatprep.subr.mxu0 0.0
    %129 = vmatpush2.msra.mxu0 0.0
    %130 = vmatprep.subr.mxu0 0.0
    %131 = vmatpush2.msra.mxu0 0.0
    %132 = vmatprep.subr.mxu0 0.0
    %133 = vmatpush2.msra.mxu0 0.0
    %134 = vmatprep.subr.mxu0 0.0
    %135 = vmatpush2.msra.mxu0 0.0
    %136 = vmatprep.subr.mxu0 0.0
    %137 = vmatpush2.msra.mxu0 0.0
    %138 = vmatprep.subr.mxu0 0.0
    %139 = vmatpush2.msra.mxu0 0.0
    %140 = vmatprep.subr.mxu0 0.0
    %141 = vmatpush2.msra.mxu0 0.0
    %142 = vmatprep.subr.mxu0 0.0
    %143 = vmatpush2.msra.mxu0 0.0
    %144 = vmatprep.subr.mxu0 0.0
    %145 = vmatpush2.msra.mxu0 0.0
    %146 = vmatprep.subr.mxu0 0.0
    %147 = vmatpush2.msra.mxu0 0.0
    %148 = vmatprep.subr.mxu0 0.0
    %149 = vmatpush2.msra.mxu0 0.0
    %150 = vmatprep.subr.mxu0 0.0
    %151 = vmatpush2.msra.mxu0 0.0
    %152 = vmatprep.mubr.f32.mxu0 0.0
    %153 = vmatmul.mubr.f32.gmra.mxu0 %v44
    %v154 = vpop.f32.mrf.mxu0
    %v155 = vadd.f32 0.0, %v154
    %v156 = vpop.f32.mrf.mxu0
    %157 = vmatprep.mubr.f32.mxu0 0.0
    %158 = vmatmul.mubr.f32.gmra.mxu0 %v47
    %v159 = vpop.f32.mrf.mxu0
    %v160 = vadd.f32 0.0, %v159
    %v161 = vpop.f32.mrf.mxu0
    %162 = vmatprep.mubr.f32.mxu0 0.0
    %163 = vmatmul.mubr.f32.gmra.mxu0 %v50
    %v164 = vpop.f32.mrf.mxu0
    %v165 = vadd.f32 0.0, %v164
    %v166 = vpop.f32.mrf.mxu0
    %167 = vmatprep.mubr.f32.mxu0 0.0
    %168 = vmatmul.mubr.f32.gmra.mxu0 %v53
    %v169 = vpop.f32.mrf.mxu0
    %v170 = vadd.f32 0.0, %v169
    %v171 = vpop.f32.mrf.mxu0
    %172 = vmatprep.mubr.f32.mxu0 0.0
    %173 = vmatmul.mubr.f32.gmra.mxu0 %v56
    %v174 = vpop.f32.mrf.mxu0
    %v175 = vadd.f32 0.0, %v174
    %v176 = vpop.f32.mrf.mxu0
    %177 = vmatprep.mubr.f32.mxu0 0.0
    %178 = vmatmul.mubr.f32.gmra.mxu0 %v59
    %v179 = vpop.f32.mrf.mxu0
    %v180 = vadd.f32 0.0, %v179
    %v181 = vpop.f32.mrf.mxu0
    %182 = vmatprep.mubr.f32.mxu0 0.0
    %183 = vmatmul.mubr.f32.gmra.mxu0 %v62
    %v184 = vpop.f32.mrf.mxu0
    %v185 = vadd.f32 0.0, %v184
    %v186 = vpop.f32.mrf.mxu0
    %187 = vmatprep.mubr.f32.mxu0 0.0
    %188 = vmatmul.mubr.f32.gmra.mxu0 %v65
    %v189 = vpop.f32.mrf.mxu0
    %v190 = vadd.f32 0.0, %v189
    %v191 = vpop.f32.mrf.mxu0
    %192 = vmatprep.mubr.f32.mxu0 0.0
    %193 = vmatmul.mubr.f32.gmra.mxu0 %v68
    %v194 = vpop.f32.mrf.mxu0
    %v195 = vadd.f32 0.0, %v194
    %v196 = vpop.f32.mrf.mxu0
    %197 = vmatprep.mubr.f32.mxu0 0.0
    %198 = vmatmul.mubr.f32.gmra.mxu0 %v71
    %v199 = vpop.f32.mrf.mxu0
    %v200 = vadd.f32 0.0, %v199
    %v201 = vpop.f32.mrf.mxu0
    %202 = vmatprep.mubr.f32.mxu0 0.0
    %203 = vmatmul.mubr.f32.gmra.mxu0 %v74
    %v204 = vpop.f32.mrf.mxu0
    %v205 = vadd.f32 0.0, %v204
    %v206 = vpop.f32.mrf.mxu0
    %207 = vmatprep.mubr.f32.mxu0 0.0
    %208 = vmatmul.mubr.f32.gmra.mxu0 %v77
    %v209 = vpop.f32.mrf.mxu0
    %v210 = vadd.f32 0.0, %v209
    %v211 = vpop.f32.mrf.mxu0
    %212 = vmatprep.mubr.f32.mxu0 0.0
    %213 = vmatmul.mubr.f32.gmra.mxu0 %v80
    %v214 = vpop.f32.mrf.mxu0
    %v215 = vadd.f32 0.0, %v214
    %v216 = vpop.f32.mrf.mxu0
    %217 = vmatprep.mubr.f32.mxu0 0.0
    %218 = vmatmul.mubr.f32.gmra.mxu0 %v83
    %v219 = vpop.f32.mrf.mxu0
    %v220 = vadd.f32 0.0, %v219
    %v221 = vpop.f32.mrf.mxu0
    %222 = vmatprep.mubr.f32.mxu0 0.0
    %223 = vmatmul.mubr.f32.gmra.mxu0 %v86
    %v224 = vpop.f32.mrf.mxu0
    %v225 = vadd.f32 0.0, %v224
    %v226 = vpop.f32.mrf.mxu0
    %227 = vdwg.mxu0
    %v228 = vtanh.pop %v155
    %v229 = vtanh.pop %v160
    %v230 = vtanh.pop %v165
    %v231 = vtanh.pop %v170
    %v232 = vtanh.pop %v175
    %v233 = vtanh.pop %v180
    %v234 = vtanh.pop %v185
    %v235 = vtanh.pop %v190
    %v236 = vtanh.pop %v195
    %v237 = vtanh.pop %v200
    %v238 = vtanh.pop %v205
    %v239 = vtanh.pop %v210
    %v240 = vtanh.pop %v215
    %v241 = vtanh.pop %v220
    %v242 = vtanh.pop %v225
    %v243 = vld [vmem:[%s2] sm:$0xff]
    %v244 = vld [vmem:[%s3] sm:$0xff]
    %246 = vset.pattern.permute.xlu0 0
    %247 = vperm.xlu0 %246, %v244
    %v248 = vpop.permute.xlu0 %247
    %vm250 = vcmask 982016
    %v252 = vsel %vm250, %v243, 0
    %254 = vmatprep.subr.mxu0 0.0
    %255 = vmatpush1.msra.mxu0 0.0
    %256 = vmatprep.subr.mxu0 0.0
    %257 = vmatpush1.msra.mxu0 %v242
    %258 = vmatprep.subr.mxu0 0.0
    %259 = vmatpush1.msra.mxu0 %v241
    %260 = vmatprep.subr.mxu0 0.0
    %261 = vmatpush1.msra.mxu0 %v240
    %262 = vmatprep.subr.mxu0 0.0
    %263 = vmatpush1.msra.mxu0 %v239
    %264 = vmatprep.subr.mxu0 0.0
    %265 = vmatpush1.msra.mxu0 %v238
    %266 = vmatprep.subr.mxu0 0.0
    %267 = vmatpush1.msra.mxu0 %v237
    %268 = vmatprep.subr.mxu0 0.0
    %269 = vmatpush1.msra.mxu0 %v236
    %270 = vmatprep.subr.mxu0 0.0
    %271 = vmatpush1.msra.mxu0 %v235
    %272 = vmatprep.subr.mxu0 0.0
    %273 = vmatpush1.msra.mxu0 %v234
    %274 = vmatprep.subr.mxu0 0.0
    %275 = vmatpush1.msra.mxu0 %v233
    %276 = vmatprep.subr.mxu0 0.0
    %277 = vmatpush1.msra.mxu0 %v232
    %278 = vmatprep.subr.mxu0 0.0
    %279 = vmatpush1.msra.mxu0 %v231
    %280 = vmatprep.subr.mxu0 0.0
    %281 = vmatpush1.msra.mxu0 %v230
    %282 = vmatprep.subr.mxu0 0.0
    %283 = vmatpush1.msra.mxu0 %v229
    %284 = vmatprep.subr.mxu0 0.0
    %285 = vmatpush1.msra.mxu0 %v228
    %286 = vmatprep.subr.mxu0 0.0
    %287 = vmatpush2.msra.mxu0 0.0
    %288 = vmatprep.subr.mxu0 0.0
    %289 = vmatpush2.msra.mxu0 0.0
    %290 = vmatprep.subr.mxu0 0.0
    %291 = vmatpush2.msra.mxu0 0.0
    %292 = vmatprep.subr.mxu0 0.0
    %293 = vmatpush2.msra.mxu0 0.0
    %294 = vmatprep.subr.mxu0 0.0
    %295 = vmatpush2.msra.mxu0 0.0
    %296 = vmatprep.subr.mxu0 0.0
    %297 = vmatpush2.msra.mxu0 0.0
    %298 = vmatprep.subr.mxu0 0.0
    %299 = vmatpush2.msra.mxu0 0.0
    %300 = vmatprep.subr.mxu0 0.0
    %301 = vmatpush2.msra.mxu0 0.0
    %302 = vmatprep.subr.mxu0 0.0
    %303 = vmatpush2.msra.mxu0 0.0
    %304 = vmatprep.subr.mxu0 0.0
    %305 = vmatpush2.msra.mxu0 0.0
    %306 = vmatprep.subr.mxu0 0.0
    %307 = vmatpush2.msra.mxu0 0.0
    %308 = vmatprep.subr.mxu0 0.0
    %309 = vmatpush2.msra.mxu0 0.0
    %310 = vmatprep.subr.mxu0 0.0
    %311 = vmatpush2.msra.mxu0 0.0
    %312 = vmatprep.subr.mxu0 0.0
    %313 = vmatpush2.msra.mxu0 0.0
    %314 = vmatprep.subr.mxu0 0.0
    %315 = vmatpush2.msra.mxu0 0.0
    %316 = vmatprep.subr.mxu0 0.0
    %317 = vmatpush2.msra.mxu0 0.0
    %318 = vmatprep.mubr.f32.mxu0 0.0
    %319 = vmatmul.mubr.f32.gmra.mxu0 %v252
    %v320 = vpop.f32.mrf.mxu0
    %v321 = vadd.f32 %v248, %v320
    %v322 = vpop.f32.mrf.mxu0
    %323 = vdwg.mxu0
    %v324 = vtanh.pop %v321
    %325 = vst [vmem:[#allocation2 + $0x10] sm:$0x1] %v324
    %v326 = vld [vmem:[%s1 + $0x78] sm:$0xff]
    %v327 = vld [vmem:[%s1 + $0x80] sm:$0xff]
    %v328 = vld [vmem:[%s1 + $0x88] sm:$0xff]
    %v329 = vld [vmem:[%s1 + $0x90] sm:$0xff]
    %v330 = vld [vmem:[%s1 + $0x98] sm:$0xff]
    %v331 = vld [vmem:[%s1 + $0xa0] sm:$0xff]
    %v332 = vld [vmem:[%s1 + $0xa8] sm:$0xff]
    %v333 = vld [vmem:[%s1 + $0xb0] sm:$0xff]
    %v334 = vld [vmem:[%s1 + $0xb8] sm:$0xff]
    %v335 = vld [vmem:[%s1 + $0xc0] sm:$0xff]
    %v336 = vld [vmem:[%s1 + $0xc8] sm:$0xff]
    %v337 = vld [vmem:[%s1 + $0xd0] sm:$0xff]
    %v338 = vld [vmem:[%s1 + $0xd8] sm:$0xff]
    %v339 = vld [vmem:[%s1 + $0xe0] sm:$0xff]
    %v340 = vld [vmem:[%s1 + $0xe8] sm:$0xff]
    %v341 = vld [vmem:[%s1 + $0xf0] sm:$0xff]
    %v342 = vld [vmem:[%s1 + $0xf8] sm:$0xff]
    %v343 = vld [vmem:[%s1 + $0x100] sm:$0xff]
    %v344 = vld [vmem:[%s1 + $0x108] sm:$0xff]
    %v345 = vld [vmem:[%s1 + $0x110] sm:$0xff]
    %v346 = vld [vmem:[%s1 + $0x118] sm:$0xff]
    %v347 = vld [vmem:[%s1 + $0x120] sm:$0xff]
    %v348 = vld [vmem:[%s1 + $0x128] sm:$0xff]
    %v349 = vld [vmem:[%s1 + $0x130] sm:$0xff]
    %v350 = vld [vmem:[%s1 + $0x138] sm:$0xff]
    %v351 = vld [vmem:[#allocation2] sm:$0xff]
    %v352 = vld [vmem:[#allocation2 + $0x8] sm:$0xff]
    %v353 = vld [vmem:[#allocation2 + $0x10] sm:$0xff]
    %v355 = vsel %vm42, %v326, 0
    %v358 = vsel %vm42, %v327, 0
    %v361 = vsel %vm42, %v328, 0
    %v364 = vsel %vm42, %v329, 0
    %v367 = vsel %vm42, %v330, 0
    %v370 = vsel %vm42, %v331, 0
    %v373 = vsel %vm42, %v332, 0
    %v376 = vsel %vm42, %v333, 0
    %v379 = vsel %vm42, %v334, 0
    %v382 = vsel %vm42, %v335, 0
    %v385 = vsel %vm42, %v336, 0
    %v388 = vsel %vm42, %v337, 0
    %v391 = vsel %vm42, %v338, 0
    %v394 = vsel %vm42, %v339, 0
    %v397 = vsel %vm42, %v340, 0
    %v400 = vsel %vm42, %v341, 0
    %v403 = vsel %vm42, %v342, 0
    %v406 = vsel %vm42, %v343, 0
    %v409 = vsel %vm42, %v344, 0
    %v412 = vsel %vm42, %v345, 0
    %v415 = vsel %vm42, %v346, 0
    %v418 = vsel %vm42, %v347, 0
    %v421 = vsel %vm42, %v348, 0
    %v424 = vsel %vm42, %v349, 0
    %v427 = vsel %vm42, %v350, 0
    %429 = vmatprep.subr.mxu0 0.0
    %430 = vmatpush1.msra.mxu0 0.0
    %431 = vmatprep.subr.mxu0 0.0
    %432 = vmatpush1.msra.mxu0 0.0
    %433 = vmatprep.subr.mxu0 0.0
    %434 = vmatpush1.msra.mxu0 0.0
    %435 = vmatprep.subr.mxu0 0.0
    %436 = vmatpush1.msra.mxu0 0.0
    %437 = vmatprep.subr.mxu0 0.0
    %438 = vmatpush1.msra.mxu0 0.0
    %439 = vmatprep.subr.mxu0 0.0
    %440 = vmatpush1.msra.mxu0 0.0
    %441 = vmatprep.subr.mxu0 0.0
    %442 = vmatpush1.msra.mxu0 0.0
    %443 = vmatprep.subr.mxu0 0.0
    %444 = vmatpush1.msra.mxu0 0.0
    %445 = vmatprep.subr.mxu0 0.0
    %446 = vmatpush1.msra.mxu0 0.0
    %447 = vmatprep.subr.mxu0 0.0
    %448 = vmatpush1.msra.mxu0 0.0
    %449 = vmatprep.subr.mxu0 0.0
    %450 = vmatpush1.msra.mxu0 0.0
    %451 = vmatprep.subr.mxu0 0.0
    %452 = vmatpush1.msra.mxu0 0.0
    %453 = vmatprep.subr.mxu0 0.0
    %454 = vmatpush1.msra.mxu0 0.0
    %455 = vmatprep.subr.mxu0 0.0
    %456 = vmatpush1.msra.mxu0 %v353
    %457 = vmatprep.subr.mxu0 0.0
    %458 = vmatpush1.msra.mxu0 %v352
    %459 = vmatprep.subr.mxu0 0.0
    %460 = vmatpush1.msra.mxu0 %v351
    %461 = vmatprep.subr.mxu0 0.0
    %462 = vmatpush2.msra.mxu0 0.0
    %463 = vmatprep.subr.mxu0 0.0
    %464 = vmatpush2.msra.mxu0 0.0
    %465 = vmatprep.subr.mxu0 0.0
    %466 = vmatpush2.msra.mxu0 0.0
    %467 = vmatprep.subr.mxu0 0.0
    %468 = vmatpush2.msra.mxu0 0.0
    %469 = vmatprep.subr.mxu0 0.0
    %470 = vmatpush2.msra.mxu0 0.0
    %471 = vmatprep.subr.mxu0 0.0
    %472 = vmatpush2.msra.mxu0 0.0
    %473 = vmatprep.subr.mxu0 0.0
    %474 = vmatpush2.msra.mxu0 0.0
    %475 = vmatprep.subr.mxu0 0.0
    %476 = vmatpush2.msra.mxu0 0.0
    %477 = vmatprep.subr.mxu0 0.0
    %478 = vmatpush2.msra.mxu0 0.0
    %479 = vmatprep.subr.mxu0 0.0
    %480 = vmatpush2.msra.mxu0 0.0
    %481 = vmatprep.subr.mxu0 0.0
    %482 = vmatpush2.msra.mxu0 0.0
    %483 = vmatprep.subr.mxu0 0.0
    %484 = vmatpush2.msra.mxu0 0.0
    %485 = vmatprep.subr.mxu0 0.0
    %486 = vmatpush2.msra.mxu0 0.0
    %487 = vmatprep.subr.mxu0 0.0
    %488 = vmatpush2.msra.mxu0 0.0
    %489 = vmatprep.subr.mxu0 0.0
    %490 = vmatpush2.msra.mxu0 0.0
    %491 = vmatprep.subr.mxu0 0.0
    %492 = vmatpush2.msra.mxu0 0.0
    %493 = vmatprep.mubr.f32.mxu0 0.0
    %494 = vmatmul.mubr.f32.gmra.mxu0 %v355
    %v495 = vpop.f32.mrf.mxu0
    %v496 = vadd.f32 0.0, %v495
    %v497 = vpop.f32.mrf.mxu0
    %498 = vmatprep.mubr.f32.mxu0 0.0
    %499 = vmatmul.mubr.f32.gmra.mxu0 %v358
    %v500 = vpop.f32.mrf.mxu0
    %v501 = vadd.f32 0.0, %v500
    %v502 = vpop.f32.mrf.mxu0
    %503 = vmatprep.mubr.f32.mxu0 0.0
    %504 = vmatmul.mubr.f32.gmra.mxu0 %v361
    %v505 = vpop.f32.mrf.mxu0
    %v506 = vadd.f32 0.0, %v505
    %v507 = vpop.f32.mrf.mxu0
    %508 = vmatprep.mubr.f32.mxu0 0.0
    %509 = vmatmul.mubr.f32.gmra.mxu0 %v364
    %v510 = vpop.f32.mrf.mxu0
    %v511 = vadd.f32 0.0, %v510
    %v512 = vpop.f32.mrf.mxu0
    %513 = vmatprep.mubr.f32.mxu0 0.0
    %514 = vmatmul.mubr.f32.gmra.mxu0 %v367
    %v515 = vpop.f32.mrf.mxu0
    %v516 = vadd.f32 0.0, %v515
    %v517 = vpop.f32.mrf.mxu0
    %518 = vmatprep.mubr.f32.mxu0 0.0
    %519 = vmatmul.mubr.f32.gmra.mxu0 %v370
    %v520 = vpop.f32.mrf.mxu0
    %v521 = vadd.f32 0.0, %v520
    %v522 = vpop.f32.mrf.mxu0
    %523 = vmatprep.mubr.f32.mxu0 0.0
    %524 = vmatmul.mubr.f32.gmra.mxu0 %v373
    %v525 = vpop.f32.mrf.mxu0
    %v526 = vadd.f32 0.0, %v525
    %v527 = vpop.f32.mrf.mxu0
    %528 = vmatprep.mubr.f32.mxu0 0.0
    %529 = vmatmul.mubr.f32.gmra.mxu0 %v376
    %v530 = vpop.f32.mrf.mxu0
    %v531 = vadd.f32 0.0, %v530
    %v532 = vpop.f32.mrf.mxu0
    %533 = vmatprep.mubr.f32.mxu0 0.0
    %534 = vmatmul.mubr.f32.gmra.mxu0 %v379
    %v535 = vpop.f32.mrf.mxu0
    %v536 = vadd.f32 0.0, %v535
    %v537 = vpop.f32.mrf.mxu0
    %538 = vmatprep.mubr.f32.mxu0 0.0
    %539 = vmatmul.mubr.f32.gmra.mxu0 %v382
    %v540 = vpop.f32.mrf.mxu0
    %v541 = vadd.f32 0.0, %v540
    %v542 = vpop.f32.mrf.mxu0
    %543 = vmatprep.mubr.f32.mxu0 0.0
    %544 = vmatmul.mubr.f32.gmra.mxu0 %v385
    %v545 = vpop.f32.mrf.mxu0
    %v546 = vadd.f32 0.0, %v545
    %v547 = vpop.f32.mrf.mxu0
    %548 = vmatprep.mubr.f32.mxu0 0.0
    %549 = vmatmul.mubr.f32.gmra.mxu0 %v388
    %v550 = vpop.f32.mrf.mxu0
    %v551 = vadd.f32 0.0, %v550
    %v552 = vpop.f32.mrf.mxu0
    %553 = vmatprep.mubr.f32.mxu0 0.0
    %554 = vmatmul.mubr.f32.gmra.mxu0 %v391
    %v555 = vpop.f32.mrf.mxu0
    %v556 = vadd.f32 0.0, %v555
    %v557 = vpop.f32.mrf.mxu0
    %558 = vmatprep.mubr.f32.mxu0 0.0
    %559 = vmatmul.mubr.f32.gmra.mxu0 %v394
    %v560 = vpop.f32.mrf.mxu0
    %v561 = vadd.f32 0.0, %v560
    %v562 = vpop.f32.mrf.mxu0
    %563 = vmatprep.mubr.f32.mxu0 0.0
    %564 = vmatmul.mubr.f32.gmra.mxu0 %v397
    %v565 = vpop.f32.mrf.mxu0
    %v566 = vadd.f32 0.0, %v565
    %v567 = vpop.f32.mrf.mxu0
    %568 = vmatprep.mubr.f32.mxu0 0.0
    %569 = vmatmul.mubr.f32.gmra.mxu0 %v400
    %v570 = vpop.f32.mrf.mxu0
    %v571 = vadd.f32 0.0, %v570
    %v572 = vpop.f32.mrf.mxu0
    %573 = vmatprep.mubr.f32.mxu0 0.0
    %574 = vmatmul.mubr.f32.gmra.mxu0 %v403
    %v575 = vpop.f32.mrf.mxu0
    %v576 = vadd.f32 0.0, %v575
    %v577 = vpop.f32.mrf.mxu0
    %578 = vmatprep.mubr.f32.mxu0 0.0
    %579 = vmatmul.mubr.f32.gmra.mxu0 %v406
    %v580 = vpop.f32.mrf.mxu0
    %v581 = vadd.f32 0.0, %v580
    %v582 = vpop.f32.mrf.mxu0
    %583 = vmatprep.mubr.f32.mxu0 0.0
    %584 = vmatmul.mubr.f32.gmra.mxu0 %v409
    %v585 = vpop.f32.mrf.mxu0
    %v586 = vadd.f32 0.0, %v585
    %v587 = vpop.f32.mrf.mxu0
    %588 = vmatprep.mubr.f32.mxu0 0.0
    %589 = vmatmul.mubr.f32.gmra.mxu0 %v412
    %v590 = vpop.f32.mrf.mxu0
    %v591 = vadd.f32 0.0, %v590
    %v592 = vpop.f32.mrf.mxu0
    %593 = vmatprep.mubr.f32.mxu0 0.0
    %594 = vmatmul.mubr.f32.gmra.mxu0 %v415
    %v595 = vpop.f32.mrf.mxu0
    %v596 = vadd.f32 0.0, %v595
    %v597 = vpop.f32.mrf.mxu0
    %598 = vmatprep.mubr.f32.mxu0 0.0
    %599 = vmatmul.mubr.f32.gmra.mxu0 %v418
    %v600 = vpop.f32.mrf.mxu0
    %v601 = vadd.f32 0.0, %v600
    %v602 = vpop.f32.mrf.mxu0
    %603 = vmatprep.mubr.f32.mxu0 0.0
    %604 = vmatmul.mubr.f32.gmra.mxu0 %v421
    %v605 = vpop.f32.mrf.mxu0
    %v606 = vadd.f32 0.0, %v605
    %v607 = vpop.f32.mrf.mxu0
    %608 = vmatprep.mubr.f32.mxu0 0.0
    %609 = vmatmul.mubr.f32.gmra.mxu0 %v424
    %v610 = vpop.f32.mrf.mxu0
    %v611 = vadd.f32 0.0, %v610
    %v612 = vpop.f32.mrf.mxu0
    %613 = vmatprep.mubr.f32.mxu0 0.0
    %614 = vmatmul.mubr.f32.gmra.mxu0 %v427
    %v615 = vpop.f32.mrf.mxu0
    %v616 = vadd.f32 0.0, %v615
    %v617 = vpop.f32.mrf.mxu0
    %618 = vdwg.mxu0
    %v619 = vtanh.pop %v496
    %v620 = vtanh.pop %v501
    %v621 = vtanh.pop %v506
    %v622 = vtanh.pop %v511
    %v623 = vtanh.pop %v516
    %v624 = vtanh.pop %v521
    %v625 = vtanh.pop %v526
    %v626 = vtanh.pop %v531
    %v627 = vtanh.pop %v536
    %v628 = vtanh.pop %v541
    %v629 = vtanh.pop %v546
    %v630 = vtanh.pop %v551
    %v631 = vtanh.pop %v556
    %v632 = vtanh.pop %v561
    %v633 = vtanh.pop %v566
    %v634 = vtanh.pop %v571
    %v635 = vtanh.pop %v576
    %v636 = vtanh.pop %v581
    %v637 = vtanh.pop %v586
    %v638 = vtanh.pop %v591
    %v639 = vtanh.pop %v596
    %v640 = vtanh.pop %v601
    %v641 = vtanh.pop %v606
    %v642 = vtanh.pop %v611
    %v643 = vtanh.pop %v616
    %v644 = vld [vmem:[%s2 + $0x10] sm:$0xff]
    %v645 = vld [vmem:[%s2 + $0x18] sm:$0xff]
    %v646 = vld [vmem:[%s3 + $0x8] sm:$0xff]
    %648 = vset.pattern.permute.xlu0 0
    %649 = vperm.xlu0 %648, %v646
    %v650 = vpop.permute.xlu0 %649
    %vm652 = vcmask 588800
    %v654 = vsel %vm652, %v645, 0
    %656 = vmatprep.subr.mxu0 0.0
    %657 = vmatpush1.msra.mxu0 %v634
    %658 = vmatprep.subr.mxu0 0.0
    %659 = vmatpush1.msra.mxu0 %v633
    %660 = vmatprep.subr.mxu0 0.0
    %661 = vmatpush1.msra.mxu0 %v632
    %662 = vmatprep.subr.mxu0 0.0
    %663 = vmatpush1.msra.mxu0 %v631
    %664 = vmatprep.subr.mxu0 0.0
    %665 = vmatpush1.msra.mxu0 %v630
    %666 = vmatprep.subr.mxu0 0.0
    %667 = vmatpush1.msra.mxu0 %v629
    %668 = vmatprep.subr.mxu0 0.0
    %669 = vmatpush1.msra.mxu0 %v628
    %670 = vmatprep.subr.mxu0 0.0
    %671 = vmatpush1.msra.mxu0 %v627
    %672 = vmatprep.subr.mxu0 0.0
    %673 = vmatpush1.msra.mxu0 %v626
    %674 = vmatprep.subr.mxu0 0.0
    %675 = vmatpush1.msra.mxu0 %v625
    %676 = vmatprep.subr.mxu0 0.0
    %677 = vmatpush1.msra.mxu0 %v624
    %678 = vmatprep.subr.mxu0 0.0
    %679 = vmatpush1.msra.mxu0 %v623
    %680 = vmatprep.subr.mxu0 0.0
    %681 = vmatpush1.msra.mxu0 %v622
    %682 = vmatprep.subr.mxu0 0.0
    %683 = vmatpush1.msra.mxu0 %v621
    %684 = vmatprep.subr.mxu0 0.0
    %685 = vmatpush1.msra.mxu0 %v620
    %686 = vmatprep.subr.mxu0 0.0
    %687 = vmatpush1.msra.mxu0 %v619
    %688 = vmatprep.subr.mxu0 0.0
    %689 = vmatpush2.msra.mxu0 0.0
    %690 = vmatprep.subr.mxu0 0.0
    %691 = vmatpush2.msra.mxu0 0.0
    %692 = vmatprep.subr.mxu0 0.0
    %693 = vmatpush2.msra.mxu0 0.0
    %694 = vmatprep.subr.mxu0 0.0
    %695 = vmatpush2.msra.mxu0 0.0
    %696 = vmatprep.subr.mxu0 0.0
    %697 = vmatpush2.msra.mxu0 0.0
    %698 = vmatprep.subr.mxu0 0.0
    %699 = vmatpush2.msra.mxu0 0.0
    %700 = vmatprep.subr.mxu0 0.0
    %701 = vmatpush2.msra.mxu0 0.0
    %702 = vmatprep.subr.mxu0 0.0
    %703 = vmatpush2.msra.mxu0 %v643
    %704 = vmatprep.subr.mxu0 0.0
    %705 = vmatpush2.msra.mxu0 %v642
    %706 = vmatprep.subr.mxu0 0.0
    %707 = vmatpush2.msra.mxu0 %v641
    %708 = vmatprep.subr.mxu0 0.0
    %709 = vmatpush2.msra.mxu0 %v640
    %710 = vmatprep.subr.mxu0 0.0
    %711 = vmatpush2.msra.mxu0 %v639
    %712 = vmatprep.subr.mxu0 0.0
    %713 = vmatpush2.msra.mxu0 %v638
    %714 = vmatprep.subr.mxu0 0.0
    %715 = vmatpush2.msra.mxu0 %v637
    %716 = vmatprep.subr.mxu0 0.0
    %717 = vmatpush2.msra.mxu0 %v636
    %718 = vmatprep.subr.mxu0 0.0
    %719 = vmatpush2.msra.mxu0 %v635
    %720 = vmatprep.mubr.f32.mxu0 %v654
    %721 = vmatmul.mubr.f32.gmra.mxu0 %v644
    %v722 = vpop.f32.mrf.mxu0
    %v723 = vadd.f32 %v650, %v722
    %v724 = vpop.f32.mrf.mxu0
    %725 = vdwg.mxu0
    %v726 = vtanh.pop %v723
    %727 = vst [vmem:[#allocation2 + $0x11] sm:$0x1] %v726
    %v728 = vld [vmem:[%s1 + $0x140] sm:$0xff]
    %v729 = vld [vmem:[%s1 + $0x148] sm:$0xff]
    %v730 = vld [vmem:[%s1 + $0x150] sm:$0xff]
    %v731 = vld [vmem:[%s1 + $0x158] sm:$0xff]
    %v732 = vld [vmem:[%s1 + $0x160] sm:$0xff]
    %v733 = vld [vmem:[%s1 + $0x168] sm:$0xff]
    %v734 = vld [vmem:[%s1 + $0x170] sm:$0xff]
    %v735 = vld [vmem:[%s1 + $0x178] sm:$0xff]
    %v736 = vld [vmem:[%s1 + $0x180] sm:$0xff]
    %v737 = vld [vmem:[%s1 + $0x188] sm:$0xff]
    %v738 = vld [vmem:[%s1 + $0x190] sm:$0xff]
    %v739 = vld [vmem:[%s1 + $0x198] sm:$0xff]
    %v740 = vld [vmem:[%s1 + $0x1a0] sm:$0xff]
    %v741 = vld [vmem:[%s1 + $0x1a8] sm:$0xff]
    %v742 = vld [vmem:[%s1 + $0x1b0] sm:$0xff]
    %v743 = vld [vmem:[%s1 + $0x1b8] sm:$0xff]
    %v744 = vld [vmem:[%s1 + $0x1c0] sm:$0xff]
    %v745 = vld [vmem:[%s1 + $0x1c8] sm:$0xff]
    %v746 = vld [vmem:[%s1 + $0x1d0] sm:$0xff]
    %v747 = vld [vmem:[%s1 + $0x1d8] sm:$0xff]
    %v748 = vld [vmem:[%s1 + $0x1e0] sm:$0xff]
    %v749 = vld [vmem:[%s1 + $0x1e8] sm:$0xff]
    %v750 = vld [vmem:[%s1 + $0x1f0] sm:$0xff]
    %v751 = vld [vmem:[%s1 + $0x1f8] sm:$0xff]
    %v752 = vld [vmem:[%s1 + $0x200] sm:$0xff]
    %v753 = vld [vmem:[%s1 + $0x208] sm:$0xff]
    %v754 = vld [vmem:[%s1 + $0x210] sm:$0xff]
    %v755 = vld [vmem:[%s1 + $0x218] sm:$0xff]
    %v756 = vld [vmem:[#allocation2] sm:$0xff]
    %v757 = vld [vmem:[#allocation2 + $0x8] sm:$0xff]
    %v758 = vld [vmem:[#allocation2 + $0x10] sm:$0xff]
    %v760 = vsel %vm42, %v728, 0
    %v763 = vsel %vm42, %v729, 0
    %v766 = vsel %vm42, %v730, 0
    %v769 = vsel %vm42, %v731, 0
    %v772 = vsel %vm42, %v732, 0
    %v775 = vsel %vm42, %v733, 0
    %v778 = vsel %vm42, %v734, 0
    %v781 = vsel %vm42, %v735, 0
    %v784 = vsel %vm42, %v736, 0
    %v787 = vsel %vm42, %v737, 0
    %v790 = vsel %vm42, %v738, 0
    %v793 = vsel %vm42, %v739, 0
    %v796 = vsel %vm42, %v740, 0
    %v799 = vsel %vm42, %v741, 0
    %v802 = vsel %vm42, %v742, 0
    %v805 = vsel %vm42, %v743, 0
    %v808 = vsel %vm42, %v744, 0
    %v811 = vsel %vm42, %v745, 0
    %v814 = vsel %vm42, %v746, 0
    %v817 = vsel %vm42, %v747, 0
    %v820 = vsel %vm42, %v748, 0
    %v823 = vsel %vm42, %v749, 0
    %v826 = vsel %vm42, %v750, 0
    %v829 = vsel %vm42, %v751, 0
    %v832 = vsel %vm42, %v752, 0
    %v835 = vsel %vm42, %v753, 0
    %v838 = vsel %vm42, %v754, 0
    %v841 = vsel %vm42, %v755, 0
    %843 = vmatprep.subr.mxu0 0.0
    %844 = vmatpush1.msra.mxu0 0.0
    %845 = vmatprep.subr.mxu0 0.0
    %846 = vmatpush1.msra.mxu0 0.0
    %847 = vmatprep.subr.mxu0 0.0
    %848 = vmatpush1.msra.mxu0 0.0
    %849 = vmatprep.subr.mxu0 0.0
    %850 = vmatpush1.msra.mxu0 0.0
    %851 = vmatprep.subr.mxu0 0.0
    %852 = vmatpush1.msra.mxu0 0.0
    %853 = vmatprep.subr.mxu0 0.0
    %854 = vmatpush1.msra.mxu0 0.0
    %855 = vmatprep.subr.mxu0 0.0
    %856 = vmatpush1.msra.mxu0 0.0
    %857 = vmatprep.subr.mxu0 0.0
    %858 = vmatpush1.msra.mxu0 0.0
    %859 = vmatprep.subr.mxu0 0.0
    %860 = vmatpush1.msra.mxu0 0.0
    %861 = vmatprep.subr.mxu0 0.0
    %862 = vmatpush1.msra.mxu0 0.0
    %863 = vmatprep.subr.mxu0 0.0
    %864 = vmatpush1.msra.mxu0 0.0
    %865 = vmatprep.subr.mxu0 0.0
    %866 = vmatpush1.msra.mxu0 0.0
    %867 = vmatprep.subr.mxu0 0.0
    %868 = vmatpush1.msra.mxu0 0.0
    %869 = vmatprep.subr.mxu0 0.0
    %870 = vmatpush1.msra.mxu0 %v758
    %871 = vmatprep.subr.mxu0 0.0
    %872 = vmatpush1.msra.mxu0 %v757
    %873 = vmatprep.subr.mxu0 0.0
    %874 = vmatpush1.msra.mxu0 %v756
    %875 = vmatprep.subr.mxu0 0.0
    %876 = vmatpush2.msra.mxu0 0.0
    %877 = vmatprep.subr.mxu0 0.0
    %878 = vmatpush2.msra.mxu0 0.0
    %879 = vmatprep.subr.mxu0 0.0
    %880 = vmatpush2.msra.mxu0 0.0
    %881 = vmatprep.subr.mxu0 0.0
    %882 = vmatpush2.msra.mxu0 0.0
    %883 = vmatprep.subr.mxu0 0.0
    %884 = vmatpush2.msra.mxu0 0.0
    %885 = vmatprep.subr.mxu0 0.0
    %886 = vmatpush2.msra.mxu0 0.0
    %887 = vmatprep.subr.mxu0 0.0
    %888 = vmatpush2.msra.mxu0 0.0
    %889 = vmatprep.subr.mxu0 0.0
    %890 = vmatpush2.msra.mxu0 0.0
    %891 = vmatprep.subr.mxu0 0.0
    %892 = vmatpush2.msra.mxu0 0.0
    %893 = vmatprep.subr.mxu0 0.0
    %894 = vmatpush2.msra.mxu0 0.0
    %895 = vmatprep.subr.mxu0 0.0
    %896 = vmatpush2.msra.mxu0 0.0
    %897 = vmatprep.subr.mxu0 0.0
    %898 = vmatpush2.msra.mxu0 0.0
    %899 = vmatprep.subr.mxu0 0.0
    %900 = vmatpush2.msra.mxu0 0.0
    %901 = vmatprep.subr.mxu0 0.0
    %902 = vmatpush2.msra.mxu0 0.0
    %903 = vmatprep.subr.mxu0 0.0
    %904 = vmatpush2.msra.mxu0 0.0
    %905 = vmatprep.subr.mxu0 0.0
    %906 = vmatpush2.msra.mxu0 0.0
    %907 = vmatprep.mubr.f32.mxu0 0.0
    %908 = vmatmul.mubr.f32.gmra.mxu0 %v760
    %v909 = vpop.f32.mrf.mxu0
    %v910 = vadd.f32 0.0, %v909
    %v911 = vpop.f32.mrf.mxu0
    %912 = vmatprep.mubr.f32.mxu0 0.0
    %913 = vmatmul.mubr.f32.gmra.mxu0 %v763
    %v914 = vpop.f32.mrf.mxu0
    %v915 = vadd.f32 0.0, %v914
    %v916 = vpop.f32.mrf.mxu0
    %917 = vmatprep.mubr.f32.mxu0 0.0
    %918 = vmatmul.mubr.f32.gmra.mxu0 %v766
    %v919 = vpop.f32.mrf.mxu0
    %v920 = vadd.f32 0.0, %v919
    %v921 = vpop.f32.mrf.mxu0
    %922 = vmatprep.mubr.f32.mxu0 0.0
    %923 = vmatmul.mubr.f32.gmra.mxu0 %v769
    %v924 = vpop.f32.mrf.mxu0
    %v925 = vadd.f32 0.0, %v924
    %v926 = vpop.f32.mrf.mxu0
    %927 = vmatprep.mubr.f32.mxu0 0.0
    %928 = vmatmul.mubr.f32.gmra.mxu0 %v772
    %v929 = vpop.f32.mrf.mxu0
    %v930 = vadd.f32 0.0, %v929
    %v931 = vpop.f32.mrf.mxu0
    %932 = vmatprep.mubr.f32.mxu0 0.0
    %933 = vmatmul.mubr.f32.gmra.mxu0 %v775
    %v934 = vpop.f32.mrf.mxu0
    %v935 = vadd.f32 0.0, %v934
    %v936 = vpop.f32.mrf.mxu0
    %937 = vmatprep.mubr.f32.mxu0 0.0
    %938 = vmatmul.mubr.f32.gmra.mxu0 %v778
    %v939 = vpop.f32.mrf.mxu0
    %v940 = vadd.f32 0.0, %v939
    %v941 = vpop.f32.mrf.mxu0
    %942 = vmatprep.mubr.f32.mxu0 0.0
    %943 = vmatmul.mubr.f32.gmra.mxu0 %v781
    %v944 = vpop.f32.mrf.mxu0
    %v945 = vadd.f32 0.0, %v944
    %v946 = vpop.f32.mrf.mxu0
    %947 = vmatprep.mubr.f32.mxu0 0.0
    %948 = vmatmul.mubr.f32.gmra.mxu0 %v784
    %v949 = vpop.f32.mrf.mxu0
    %v950 = vadd.f32 0.0, %v949
    %v951 = vpop.f32.mrf.mxu0
    %952 = vmatprep.mubr.f32.mxu0 0.0
    %953 = vmatmul.mubr.f32.gmra.mxu0 %v787
    %v954 = vpop.f32.mrf.mxu0
    %v955 = vadd.f32 0.0, %v954
    %v956 = vpop.f32.mrf.mxu0
    %957 = vmatprep.mubr.f32.mxu0 0.0
    %958 = vmatmul.mubr.f32.gmra.mxu0 %v790
    %v959 = vpop.f32.mrf.mxu0
    %v960 = vadd.f32 0.0, %v959
    %v961 = vpop.f32.mrf.mxu0
    %962 = vmatprep.mubr.f32.mxu0 0.0
    %963 = vmatmul.mubr.f32.gmra.mxu0 %v793
    %v964 = vpop.f32.mrf.mxu0
    %v965 = vadd.f32 0.0, %v964
    %v966 = vpop.f32.mrf.mxu0
    %967 = vmatprep.mubr.f32.mxu0 0.0
    %968 = vmatmul.mubr.f32.gmra.mxu0 %v796
    %v969 = vpop.f32.mrf.mxu0
    %v970 = vadd.f32 0.0, %v969
    %v971 = vpop.f32.mrf.mxu0
    %972 = vmatprep.mubr.f32.mxu0 0.0
    %973 = vmatmul.mubr.f32.gmra.mxu0 %v799
    %v974 = vpop.f32.mrf.mxu0
    %v975 = vadd.f32 0.0, %v974
    %v976 = vpop.f32.mrf.mxu0
    %977 = vmatprep.mubr.f32.mxu0 0.0
    %978 = vmatmul.mubr.f32.gmra.mxu0 %v802
    %v979 = vpop.f32.mrf.mxu0
    %v980 = vadd.f32 0.0, %v979
    %v981 = vpop.f32.mrf.mxu0
    %982 = vmatprep.mubr.f32.mxu0 0.0
    %983 = vmatmul.mubr.f32.gmra.mxu0 %v805
    %v984 = vpop.f32.mrf.mxu0
    %v985 = vadd.f32 0.0, %v984
    %v986 = vpop.f32.mrf.mxu0
    %987 = vmatprep.mubr.f32.mxu0 0.0
    %988 = vmatmul.mubr.f32.gmra.mxu0 %v808
    %v989 = vpop.f32.mrf.mxu0
    %v990 = vadd.f32 0.0, %v989
    %v991 = vpop.f32.mrf.mxu0
    %992 = vmatprep.mubr.f32.mxu0 0.0
    %993 = vmatmul.mubr.f32.gmra.mxu0 %v811
    %v994 = vpop.f32.mrf.mxu0
    %v995 = vadd.f32 0.0, %v994
    %v996 = vpop.f32.mrf.mxu0
    %997 = vmatprep.mubr.f32.mxu0 0.0
    %998 = vmatmul.mubr.f32.gmra.mxu0 %v814
    %v999 = vpop.f32.mrf.mxu0
    %v1000 = vadd.f32 0.0, %v999
    %v1001 = vpop.f32.mrf.mxu0
    %1002 = vmatprep.mubr.f32.mxu0 0.0
    %1003 = vmatmul.mubr.f32.gmra.mxu0 %v817
    %v1004 = vpop.f32.mrf.mxu0
    %v1005 = vadd.f32 0.0, %v1004
    %v1006 = vpop.f32.mrf.mxu0
    %1007 = vmatprep.mubr.f32.mxu0 0.0
    %1008 = vmatmul.mubr.f32.gmra.mxu0 %v820
    %v1009 = vpop.f32.mrf.mxu0
    %v1010 = vadd.f32 0.0, %v1009
    %v1011 = vpop.f32.mrf.mxu0
    %1012 = vmatprep.mubr.f32.mxu0 0.0
    %1013 = vmatmul.mubr.f32.gmra.mxu0 %v823
    %v1014 = vpop.f32.mrf.mxu0
    %v1015 = vadd.f32 0.0, %v1014
    %v1016 = vpop.f32.mrf.mxu0
    %1017 = vmatprep.mubr.f32.mxu0 0.0
    %1018 = vmatmul.mubr.f32.gmra.mxu0 %v826
    %v1019 = vpop.f32.mrf.mxu0
    %v1020 = vadd.f32 0.0, %v1019
    %v1021 = vpop.f32.mrf.mxu0
    %1022 = vmatprep.mubr.f32.mxu0 0.0
    %1023 = vmatmul.mubr.f32.gmra.mxu0 %v829
    %v1024 = vpop.f32.mrf.mxu0
    %v1025 = vadd.f32 0.0, %v1024
    %v1026 = vpop.f32.mrf.mxu0
    %1027 = vmatprep.mubr.f32.mxu0 0.0
    %1028 = vmatmul.mubr.f32.gmra.mxu0 %v832
    %v1029 = vpop.f32.mrf.mxu0
    %v1030 = vadd.f32 0.0, %v1029
    %v1031 = vpop.f32.mrf.mxu0
    %1032 = vmatprep.mubr.f32.mxu0 0.0
    %1033 = vmatmul.mubr.f32.gmra.mxu0 %v835
    %v1034 = vpop.f32.mrf.mxu0
    %v1035 = vadd.f32 0.0, %v1034
    %v1036 = vpop.f32.mrf.mxu0
    %1037 = vmatprep.mubr.f32.mxu0 0.0
    %1038 = vmatmul.mubr.f32.gmra.mxu0 %v838
    %v1039 = vpop.f32.mrf.mxu0
    %v1040 = vadd.f32 0.0, %v1039
    %v1041 = vpop.f32.mrf.mxu0
    %1042 = vmatprep.mubr.f32.mxu0 0.0
    %1043 = vmatmul.mubr.f32.gmra.mxu0 %v841
    %v1044 = vpop.f32.mrf.mxu0
    %v1045 = vadd.f32 0.0, %v1044
    %v1046 = vpop.f32.mrf.mxu0
    %1047 = vdwg.mxu0
    %v1048 = vtanh.pop %v910
    %v1049 = vtanh.pop %v915
    %v1050 = vtanh.pop %v920
    %v1051 = vtanh.pop %v925
    %v1052 = vtanh.pop %v930
    %v1053 = vtanh.pop %v935
    %v1054 = vtanh.pop %v940
    %v1055 = vtanh.pop %v945
    %v1056 = vtanh.pop %v950
    %v1057 = vtanh.pop %v955
    %v1058 = vtanh.pop %v960
    %v1059 = vtanh.pop %v965
    %v1060 = vtanh.pop %v970
    %v1061 = vtanh.pop %v975
    %v1062 = vtanh.pop %v980
    %v1063 = vtanh.pop %v985
    %v1064 = vtanh.pop %v990
    %v1065 = vtanh.pop %v995
    %v1066 = vtanh.pop %v1000
    %v1067 = vtanh.pop %v1005
    %v1068 = vtanh.pop %v1010
    %v1069 = vtanh.pop %v1015
    %v1070 = vtanh.pop %v1020
    %v1071 = vtanh.pop %v1025
    %v1072 = vtanh.pop %v1030
    %v1073 = vtanh.pop %v1035
    %v1074 = vtanh.pop %v1040
    %v1075 = vtanh.pop %v1045
    %v1076 = vld [vmem:[%s2 + $0x20] sm:$0xff]
    %v1077 = vld [vmem:[%s2 + $0x28] sm:$0xff]
    %v1078 = vld [vmem:[%s3 + $0x10] sm:$0xff]
    %1080 = vset.pattern.permute.xlu0 0
    %1081 = vperm.xlu0 %1080, %v1078
    %v1082 = vpop.permute.xlu0 %1081
    %vm1084 = vcmask 785408
    %v1086 = vsel %vm1084, %v1077, 0
    %1088 = vmatprep.subr.mxu0 0.0
    %1089 = vmatpush1.msra.mxu0 %v1063
    %1090 = vmatprep.subr.mxu0 0.0
    %1091 = vmatpush1.msra.mxu0 %v1062
    %1092 = vmatprep.subr.mxu0 0.0
    %1093 = vmatpush1.msra.mxu0 %v1061
    %1094 = vmatprep.subr.mxu0 0.0
    %1095 = vmatpush1.msra.mxu0 %v1060
    %1096 = vmatprep.subr.mxu0 0.0
    %1097 = vmatpush1.msra.mxu0 %v1059
    %1098 = vmatprep.subr.mxu0 0.0
    %1099 = vmatpush1.msra.mxu0 %v1058
    %1100 = vmatprep.subr.mxu0 0.0
    %1101 = vmatpush1.msra.mxu0 %v1057
    %1102 = vmatprep.subr.mxu0 0.0
    %1103 = vmatpush1.msra.mxu0 %v1056
    %1104 = vmatprep.subr.mxu0 0.0
    %1105 = vmatpush1.msra.mxu0 %v1055
    %1106 = vmatprep.subr.mxu0 0.0
    %1107 = vmatpush1.msra.mxu0 %v1054
    %1108 = vmatprep.subr.mxu0 0.0
    %1109 = vmatpush1.msra.mxu0 %v1053
    %1110 = vmatprep.subr.mxu0 0.0
    %1111 = vmatpush1.msra.mxu0 %v1052
    %1112 = vmatprep.subr.mxu0 0.0
    %1113 = vmatpush1.msra.mxu0 %v1051
    %1114 = vmatprep.subr.mxu0 0.0
    %1115 = vmatpush1.msra.mxu0 %v1050
    %1116 = vmatprep.subr.mxu0 0.0
    %1117 = vmatpush1.msra.mxu0 %v1049
    %1118 = vmatprep.subr.mxu0 0.0
    %1119 = vmatpush1.msra.mxu0 %v1048
    %1120 = vmatprep.subr.mxu0 0.0
    %1121 = vmatpush2.msra.mxu0 0.0
    %1122 = vmatprep.subr.mxu0 0.0
    %1123 = vmatpush2.msra.mxu0 0.0
    %1124 = vmatprep.subr.mxu0 0.0
    %1125 = vmatpush2.msra.mxu0 0.0
    %1126 = vmatprep.subr.mxu0 0.0
    %1127 = vmatpush2.msra.mxu0 0.0
    %1128 = vmatprep.subr.mxu0 0.0
    %1129 = vmatpush2.msra.mxu0 %v1075
    %1130 = vmatprep.subr.mxu0 0.0
    %1131 = vmatpush2.msra.mxu0 %v1074
    %1132 = vmatprep.subr.mxu0 0.0
    %1133 = vmatpush2.msra.mxu0 %v1073
    %1134 = vmatprep.subr.mxu0 0.0
    %1135 = vmatpush2.msra.mxu0 %v1072
    %1136 = vmatprep.subr.mxu0 0.0
    %1137 = vmatpush2.msra.mxu0 %v1071
    %1138 = vmatprep.subr.mxu0 0.0
    %1139 = vmatpush2.msra.mxu0 %v1070
    %1140 = vmatprep.subr.mxu0 0.0
    %1141 = vmatpush2.msra.mxu0 %v1069
    %1142 = vmatprep.subr.mxu0 0.0
    %1143 = vmatpush2.msra.mxu0 %v1068
    %1144 = vmatprep.subr.mxu0 0.0
    %1145 = vmatpush2.msra.mxu0 %v1067
    %1146 = vmatprep.subr.mxu0 0.0
    %1147 = vmatpush2.msra.mxu0 %v1066
    %1148 = vmatprep.subr.mxu0 0.0
    %1149 = vmatpush2.msra.mxu0 %v1065
    %1150 = vmatprep.subr.mxu0 0.0
    %1151 = vmatpush2.msra.mxu0 %v1064
    %1152 = vmatprep.mubr.f32.mxu0 %v1086
    %1153 = vmatmul.mubr.f32.gmra.mxu0 %v1076
    %v1154 = vpop.f32.mrf.mxu0
    %v1155 = vadd.f32 %v1082, %v1154
    %v1156 = vpop.f32.mrf.mxu0
    %1157 = vdwg.mxu0
    %v1158 = vtanh.pop %v1155
    %1159 = vst [vmem:[#allocation2 + $0x12] sm:$0x1] %v1158
    %v1160 = vld [vmem:[%s1 + $0x220] sm:$0xff]
    %v1161 = vld [vmem:[%s1 + $0x228] sm:$0xff]
    %v1162 = vld [vmem:[%s1 + $0x230] sm:$0xff]
    %v1163 = vld [vmem:[%s1 + $0x238] sm:$0xff]
    %v1164 = vld [vmem:[%s1 + $0x240] sm:$0xff]
    %v1165 = vld [vmem:[%s1 + $0x248] sm:$0xff]
    %v1166 = vld [vmem:[%s1 + $0x250] sm:$0xff]
    %v1167 = vld [vmem:[%s1 + $0x258] sm:$0xff]
    %v1168 = vld [vmem:[%s1 + $0x260] sm:$0xff]
    %v1169 = vld [vmem:[%s1 + $0x268] sm:$0xff]
    %v1170 = vld [vmem:[%s1 + $0x270] sm:$0xff]
    %v1171 = vld [vmem:[%s1 + $0x278] sm:$0xff]
    %v1172 = vld [vmem:[%s1 + $0x280] sm:$0xff]
    %v1173 = vld [vmem:[%s1 + $0x288] sm:$0xff]
    %v1174 = vld [vmem:[%s1 + $0x290] sm:$0xff]
    %v1175 = vld [vmem:[%s1 + $0x298] sm:$0xff]
    %v1176 = vld [vmem:[%s1 + $0x2a0] sm:$0xff]
    %v1177 = vld [vmem:[%s1 + $0x2a8] sm:$0xff]
    %v1178 = vld [vmem:[%s1 + $0x2b0] sm:$0xff]
    %v1179 = vld [vmem:[%s1 + $0x2b8] sm:$0xff]
    %v1180 = vld [vmem:[%s1 + $0x2c0] sm:$0xff]
    %v1181 = vld [vmem:[%s1 + $0x2c8] sm:$0xff]
    %v1182 = vld [vmem:[%s1 + $0x2d0] sm:$0xff]
    %v1183 = vld [vmem:[%s1 + $0x2d8] sm:$0xff]
    %v1184 = vld [vmem:[%s1 + $0x2e0] sm:$0xff]
    %v1185 = vld [vmem:[%s1 + $0x2e8] sm:$0xff]
    %v1186 = vld [vmem:[%s1 + $0x2f0] sm:$0xff]
    %v1187 = vld [vmem:[%s1 + $0x2f8] sm:$0xff]
    %v1188 = vld [vmem:[%s1 + $0x300] sm:$0xff]
    %v1189 = vld [vmem:[%s1 + $0x308] sm:$0xff]
    %v1190 = vld [vmem:[#allocation2] sm:$0xff]
    %v1191 = vld [vmem:[#allocation2 + $0x8] sm:$0xff]
    %v1192 = vld [vmem:[#allocation2 + $0x10] sm:$0xff]
    %v1194 = vsel %vm42, %v1160, 0
    %v1197 = vsel %vm42, %v1161, 0
    %v1200 = vsel %vm42, %v1162, 0
    %v1203 = vsel %vm42, %v1163, 0
    %v1206 = vsel %vm42, %v1164, 0
    %v1209 = vsel %vm42, %v1165, 0
    %v1212 = vsel %vm42, %v1166, 0
    %v1215 = vsel %vm42, %v1167, 0
    %v1218 = vsel %vm42, %v1168, 0
    %v1221 = vsel %vm42, %v1169, 0
    %v1224 = vsel %vm42, %v1170, 0
    %v1227 = vsel %vm42, %v1171, 0
    %v1230 = vsel %vm42, %v1172, 0
    %v1233 = vsel %vm42, %v1173, 0
    %v1236 = vsel %vm42, %v1174, 0
    %v1239 = vsel %vm42, %v1175, 0
    %v1242 = vsel %vm42, %v1176, 0
    %v1245 = vsel %vm42, %v1177, 0
    %v1248 = vsel %vm42, %v1178, 0
    %v1251 = vsel %vm42, %v1179, 0
    %v1254 = vsel %vm42, %v1180, 0
    %v1257 = vsel %vm42, %v1181, 0
    %v1260 = vsel %vm42, %v1182, 0
    %v1263 = vsel %vm42, %v1183, 0
    %v1266 = vsel %vm42, %v1184, 0
    %v1269 = vsel %vm42, %v1185, 0
    %v1272 = vsel %vm42, %v1186, 0
    %v1275 = vsel %vm42, %v1187, 0
    %v1278 = vsel %vm42, %v1188, 0
    %v1281 = vsel %vm42, %v1189, 0
    %1283 = vmatprep.subr.mxu0 0.0
    %1284 = vmatpush1.msra.mxu0 0.0
    %1285 = vmatprep.subr.mxu0 0.0
    %1286 = vmatpush1.msra.mxu0 0.0
    %1287 = vmatprep.subr.mxu0 0.0
    %1288 = vmatpush1.msra.mxu0 0.0
    %1289 = vmatprep.subr.mxu0 0.0
    %1290 = vmatpush1.msra.mxu0 0.0
    %1291 = vmatprep.subr.mxu0 0.0
    %1292 = vmatpush1.msra.mxu0 0.0
    %1293 = vmatprep.subr.mxu0 0.0
    %1294 = vmatpush1.msra.mxu0 0.0
    %1295 = vmatprep.subr.mxu0 0.0
    %1296 = vmatpush1.msra.mxu0 0.0
    %1297 = vmatprep.subr.mxu0 0.0
    %1298 = vmatpush1.msra.mxu0 0.0
    %1299 = vmatprep.subr.mxu0 0.0
    %1300 = vmatpush1.msra.mxu0 0.0
    %1301 = vmatprep.subr.mxu0 0.0
    %1302 = vmatpush1.msra.mxu0 0.0
    %1303 = vmatprep.subr.mxu0 0.0
    %1304 = vmatpush1.msra.mxu0 0.0
    %1305 = vmatprep.subr.mxu0 0.0
    %1306 = vmatpush1.msra.mxu0 0.0
    %1307 = vmatprep.subr.mxu0 0.0
    %1308 = vmatpush1.msra.mxu0 0.0
    %1309 = vmatprep.subr.mxu0 0.0
    %1310 = vmatpush1.msra.mxu0 %v1192
    %1311 = vmatprep.subr.mxu0 0.0
    %1312 = vmatpush1.msra.mxu0 %v1191
    %1313 = vmatprep.subr.mxu0 0.0
    %1314 = vmatpush1.msra.mxu0 %v1190
    %1315 = vmatprep.subr.mxu0 0.0
    %1316 = vmatpush2.msra.mxu0 0.0
    %1317 = vmatprep.subr.mxu0 0.0
    %1318 = vmatpush2.msra.mxu0 0.0
    %1319 = vmatprep.subr.mxu0 0.0
    %1320 = vmatpush2.msra.mxu0 0.0
    %1321 = vmatprep.subr.mxu0 0.0
    %1322 = vmatpush2.msra.mxu0 0.0
    %1323 = vmatprep.subr.mxu0 0.0
    %1324 = vmatpush2.msra.mxu0 0.0
    %1325 = vmatprep.subr.mxu0 0.0
    %1326 = vmatpush2.msra.mxu0 0.0
    %1327 = vmatprep.subr.mxu0 0.0
    %1328 = vmatpush2.msra.mxu0 0.0
    %1329 = vmatprep.subr.mxu0 0.0
    %1330 = vmatpush2.msra.mxu0 0.0
    %1331 = vmatprep.subr.mxu0 0.0
    %1332 = vmatpush2.msra.mxu0 0.0
    %1333 = vmatprep.subr.mxu0 0.0
    %1334 = vmatpush2.msra.mxu0 0.0
    %1335 = vmatprep.subr.mxu0 0.0
    %1336 = vmatpush2.msra.mxu0 0.0
    %1337 = vmatprep.subr.mxu0 0.0
    %1338 = vmatpush2.msra.mxu0 0.0
    %1339 = vmatprep.subr.mxu0 0.0
    %1340 = vmatpush2.msra.mxu0 0.0
    %1341 = vmatprep.subr.mxu0 0.0
    %1342 = vmatpush2.msra.mxu0 0.0
    %1343 = vmatprep.subr.mxu0 0.0
    %1344 = vmatpush2.msra.mxu0 0.0
    %1345 = vmatprep.subr.mxu0 0.0
    %1346 = vmatpush2.msra.mxu0 0.0
    %1347 = vmatprep.mubr.f32.mxu0 0.0
    %1348 = vmatmul.mubr.f32.gmra.mxu0 %v1194
    %v1349 = vpop.f32.mrf.mxu0
    %v1350 = vadd.f32 0.0, %v1349
    %v1351 = vpop.f32.mrf.mxu0
    %1352 = vmatprep.mubr.f32.mxu0 0.0
    %1353 = vmatmul.mubr.f32.gmra.mxu0 %v1197
    %v1354 = vpop.f32.mrf.mxu0
    %v1355 = vadd.f32 0.0, %v1354
    %v1356 = vpop.f32.mrf.mxu0
    %1357 = vmatprep.mubr.f32.mxu0 0.0
    %1358 = vmatmul.mubr.f32.gmra.mxu0 %v1200
    %v1359 = vpop.f32.mrf.mxu0
    %v1360 = vadd.f32 0.0, %v1359
    %v1361 = vpop.f32.mrf.mxu0
    %1362 = vmatprep.mubr.f32.mxu0 0.0
    %1363 = vmatmul.mubr.f32.gmra.mxu0 %v1203
    %v1364 = vpop.f32.mrf.mxu0
    %v1365 = vadd.f32 0.0, %v1364
    %v1366 = vpop.f32.mrf.mxu0
    %1367 = vmatprep.mubr.f32.mxu0 0.0
    %1368 = vmatmul.mubr.f32.gmra.mxu0 %v1206
    %v1369 = vpop.f32.mrf.mxu0
    %v1370 = vadd.f32 0.0, %v1369
    %v1371 = vpop.f32.mrf.mxu0
    %1372 = vmatprep.mubr.f32.mxu0 0.0
    %1373 = vmatmul.mubr.f32.gmra.mxu0 %v1209
    %v1374 = vpop.f32.mrf.mxu0
    %v1375 = vadd.f32 0.0, %v1374
    %v1376 = vpop.f32.mrf.mxu0
    %1377 = vmatprep.mubr.f32.mxu0 0.0
    %1378 = vmatmul.mubr.f32.gmra.mxu0 %v1212
    %v1379 = vpop.f32.mrf.mxu0
    %v1380 = vadd.f32 0.0, %v1379
    %v1381 = vpop.f32.mrf.mxu0
    %1382 = vmatprep.mubr.f32.mxu0 0.0
    %1383 = vmatmul.mubr.f32.gmra.mxu0 %v1215
    %v1384 = vpop.f32.mrf.mxu0
    %v1385 = vadd.f32 0.0, %v1384
    %v1386 = vpop.f32.mrf.mxu0
    %1387 = vmatprep.mubr.f32.mxu0 0.0
    %1388 = vmatmul.mubr.f32.gmra.mxu0 %v1218
    %v1389 = vpop.f32.mrf.mxu0
    %v1390 = vadd.f32 0.0, %v1389
    %v1391 = vpop.f32.mrf.mxu0
    %1392 = vmatprep.mubr.f32.mxu0 0.0
    %1393 = vmatmul.mubr.f32.gmra.mxu0 %v1221
    %v1394 = vpop.f32.mrf.mxu0
    %v1395 = vadd.f32 0.0, %v1394
    %v1396 = vpop.f32.mrf.mxu0
    %1397 = vmatprep.mubr.f32.mxu0 0.0
    %1398 = vmatmul.mubr.f32.gmra.mxu0 %v1224
    %v1399 = vpop.f32.mrf.mxu0
    %v1400 = vadd.f32 0.0, %v1399
    %v1401 = vpop.f32.mrf.mxu0
    %1402 = vmatprep.mubr.f32.mxu0 0.0
    %1403 = vmatmul.mubr.f32.gmra.mxu0 %v1227
    %v1404 = vpop.f32.mrf.mxu0
    %v1405 = vadd.f32 0.0, %v1404
    %v1406 = vpop.f32.mrf.mxu0
    %1407 = vmatprep.mubr.f32.mxu0 0.0
    %1408 = vmatmul.mubr.f32.gmra.mxu0 %v1230
    %v1409 = vpop.f32.mrf.mxu0
    %v1410 = vadd.f32 0.0, %v1409
    %v1411 = vpop.f32.mrf.mxu0
    %1412 = vmatprep.mubr.f32.mxu0 0.0
    %1413 = vmatmul.mubr.f32.gmra.mxu0 %v1233
    %v1414 = vpop.f32.mrf.mxu0
    %v1415 = vadd.f32 0.0, %v1414
    %v1416 = vpop.f32.mrf.mxu0
    %1417 = vmatprep.mubr.f32.mxu0 0.0
    %1418 = vmatmul.mubr.f32.gmra.mxu0 %v1236
    %v1419 = vpop.f32.mrf.mxu0
    %v1420 = vadd.f32 0.0, %v1419
    %v1421 = vpop.f32.mrf.mxu0
    %1422 = vmatprep.mubr.f32.mxu0 0.0
    %1423 = vmatmul.mubr.f32.gmra.mxu0 %v1239
    %v1424 = vpop.f32.mrf.mxu0
    %v1425 = vadd.f32 0.0, %v1424
    %v1426 = vpop.f32.mrf.mxu0
    %1427 = vmatprep.mubr.f32.mxu0 0.0
    %1428 = vmatmul.mubr.f32.gmra.mxu0 %v1242
    %v1429 = vpop.f32.mrf.mxu0
    %v1430 = vadd.f32 0.0, %v1429
    %v1431 = vpop.f32.mrf.mxu0
    %1432 = vmatprep.mubr.f32.mxu0 0.0
    %1433 = vmatmul.mubr.f32.gmra.mxu0 %v1245
    %v1434 = vpop.f32.mrf.mxu0
    %v1435 = vadd.f32 0.0, %v1434
    %v1436 = vpop.f32.mrf.mxu0
    %1437 = vmatprep.mubr.f32.mxu0 0.0
    %1438 = vmatmul.mubr.f32.gmra.mxu0 %v1248
    %v1439 = vpop.f32.mrf.mxu0
    %v1440 = vadd.f32 0.0, %v1439
    %v1441 = vpop.f32.mrf.mxu0
    %1442 = vmatprep.mubr.f32.mxu0 0.0
    %1443 = vmatmul.mubr.f32.gmra.mxu0 %v1251
    %v1444 = vpop.f32.mrf.mxu0
    %v1445 = vadd.f32 0.0, %v1444
    %v1446 = vpop.f32.mrf.mxu0
    %1447 = vmatprep.mubr.f32.mxu0 0.0
    %1448 = vmatmul.mubr.f32.gmra.mxu0 %v1254
    %v1449 = vpop.f32.mrf.mxu0
    %v1450 = vadd.f32 0.0, %v1449
    %v1451 = vpop.f32.mrf.mxu0
    %1452 = vmatprep.mubr.f32.mxu0 0.0
    %1453 = vmatmul.mubr.f32.gmra.mxu0 %v1257
    %v1454 = vpop.f32.mrf.mxu0
    %v1455 = vadd.f32 0.0, %v1454
    %v1456 = vpop.f32.mrf.mxu0
    %1457 = vmatprep.mubr.f32.mxu0 0.0
    %1458 = vmatmul.mubr.f32.gmra.mxu0 %v1260
    %v1459 = vpop.f32.mrf.mxu0
    %v1460 = vadd.f32 0.0, %v1459
    %v1461 = vpop.f32.mrf.mxu0
    %1462 = vmatprep.mubr.f32.mxu0 0.0
    %1463 = vmatmul.mubr.f32.gmra.mxu0 %v1263
    %v1464 = vpop.f32.mrf.mxu0
    %v1465 = vadd.f32 0.0, %v1464
    %v1466 = vpop.f32.mrf.mxu0
    %1467 = vmatprep.mubr.f32.mxu0 0.0
    %1468 = vmatmul.mubr.f32.gmra.mxu0 %v1266
    %v1469 = vpop.f32.mrf.mxu0
    %v1470 = vadd.f32 0.0, %v1469
    %v1471 = vpop.f32.mrf.mxu0
    %1472 = vmatprep.mubr.f32.mxu0 0.0
    %1473 = vmatmul.mubr.f32.gmra.mxu0 %v1269
    %v1474 = vpop.f32.mrf.mxu0
    %v1475 = vadd.f32 0.0, %v1474
    %v1476 = vpop.f32.mrf.mxu0
    %1477 = vmatprep.mubr.f32.mxu0 0.0
    %1478 = vmatmul.mubr.f32.gmra.mxu0 %v1272
    %v1479 = vpop.f32.mrf.mxu0
    %v1480 = vadd.f32 0.0, %v1479
    %v1481 = vpop.f32.mrf.mxu0
    %1482 = vmatprep.mubr.f32.mxu0 0.0
    %1483 = vmatmul.mubr.f32.gmra.mxu0 %v1275
    %v1484 = vpop.f32.mrf.mxu0
    %v1485 = vadd.f32 0.0, %v1484
    %v1486 = vpop.f32.mrf.mxu0
    %1487 = vmatprep.mubr.f32.mxu0 0.0
    %1488 = vmatmul.mubr.f32.gmra.mxu0 %v1278
    %v1489 = vpop.f32.mrf.mxu0
    %v1490 = vadd.f32 0.0, %v1489
    %v1491 = vpop.f32.mrf.mxu0
    %1492 = vmatprep.mubr.f32.mxu0 0.0
    %1493 = vmatmul.mubr.f32.gmra.mxu0 %v1281
    %v1494 = vpop.f32.mrf.mxu0
    %v1495 = vadd.f32 0.0, %v1494
    %v1496 = vpop.f32.mrf.mxu0
    %1497 = vdwg.mxu0
    %v1498 = vtanh.pop %v1350
    %v1499 = vtanh.pop %v1355
    %v1500 = vtanh.pop %v1360
    %v1501 = vtanh.pop %v1365
    %v1502 = vtanh.pop %v1370
    %v1503 = vtanh.pop %v1375
    %v1504 = vtanh.pop %v1380
    %v1505 = vtanh.pop %v1385
    %v1506 = vtanh.pop %v1390
    %v1507 = vtanh.pop %v1395
    %v1508 = vtanh.pop %v1400
    %v1509 = vtanh.pop %v1405
    %v1510 = vtanh.pop %v1410
    %v1511 = vtanh.pop %v1415
    %v1512 = vtanh.pop %v1420
    %v1513 = vtanh.pop %v1425
    %v1514 = vtanh.pop %v1430
    %v1515 = vtanh.pop %v1435
    %v1516 = vtanh.pop %v1440
    %v1517 = vtanh.pop %v1445
    %v1518 = vtanh.pop %v1450
    %v1519 = vtanh.pop %v1455
    %v1520 = vtanh.pop %v1460
    %v1521 = vtanh.pop %v1465
    %v1522 = vtanh.pop %v1470
    %v1523 = vtanh.pop %v1475
    %v1524 = vtanh.pop %v1480
    %v1525 = vtanh.pop %v1485
    %v1526 = vtanh.pop %v1490
    %v1527 = vtanh.pop %v1495
    %v1528 = vld [vmem:[%s2 + $0x30] sm:$0xff]
    %v1529 = vld [vmem:[%s2 + $0x38] sm:$0xff]
    %v1530 = vld [vmem:[%s3 + $0x18] sm:$0xff]
    %1532 = vset.pattern.permute.xlu0 0
    %1533 = vperm.xlu0 %1532, %v1530
    %v1534 = vpop.permute.xlu0 %1533
    %vm1536 = vcmask 916480
    %v1538 = vsel %vm1536, %v1529, 0
    %1540 = vmatprep.subr.mxu0 0.0
    %1541 = vmatpush1.msra.mxu0 %v1513
    %1542 = vmatprep.subr.mxu0 0.0
    %1543 = vmatpush1.msra.mxu0 %v1512
    %1544 = vmatprep.subr.mxu0 0.0
    %1545 = vmatpush1.msra.mxu0 %v1511
    %1546 = vmatprep.subr.mxu0 0.0
    %1547 = vmatpush1.msra.mxu0 %v1510
    %1548 = vmatprep.subr.mxu0 0.0
    %1549 = vmatpush1.msra.mxu0 %v1509
    %1550 = vmatprep.subr.mxu0 0.0
    %1551 = vmatpush1.msra.mxu0 %v1508
    %1552 = vmatprep.subr.mxu0 0.0
    %1553 = vmatpush1.msra.mxu0 %v1507
    %1554 = vmatprep.subr.mxu0 0.0
    %1555 = vmatpush1.msra.mxu0 %v1506
    %1556 = vmatprep.subr.mxu0 0.0
    %1557 = vmatpush1.msra.mxu0 %v1505
    %1558 = vmatprep.subr.mxu0 0.0
    %1559 = vmatpush1.msra.mxu0 %v1504
    %1560 = vmatprep.subr.mxu0 0.0
    %1561 = vmatpush1.msra.mxu0 %v1503
    %1562 = vmatprep.subr.mxu0 0.0
    %1563 = vmatpush1.msra.mxu0 %v1502
    %1564 = vmatprep.subr.mxu0 0.0
    %1565 = vmatpush1.msra.mxu0 %v1501
    %1566 = vmatprep.subr.mxu0 0.0
    %1567 = vmatpush1.msra.mxu0 %v1500
    %1568 = vmatprep.subr.mxu0 0.0
    %1569 = vmatpush1.msra.mxu0 %v1499
    %1570 = vmatprep.subr.mxu0 0.0
    %1571 = vmatpush1.msra.mxu0 %v1498
    %1572 = vmatprep.subr.mxu0 0.0
    %1573 = vmatpush2.msra.mxu0 0.0
    %1574 = vmatprep.subr.mxu0 0.0
    %1575 = vmatpush2.msra.mxu0 0.0
    %1576 = vmatprep.subr.mxu0 0.0
    %1577 = vmatpush2.msra.mxu0 %v1527
    %1578 = vmatprep.subr.mxu0 0.0
    %1579 = vmatpush2.msra.mxu0 %v1526
    %1580 = vmatprep.subr.mxu0 0.0
    %1581 = vmatpush2.msra.mxu0 %v1525
    %1582 = vmatprep.subr.mxu0 0.0
    %1583 = vmatpush2.msra.mxu0 %v1524
    %1584 = vmatprep.subr.mxu0 0.0
    %1585 = vmatpush2.msra.mxu0 %v1523
    %1586 = vmatprep.subr.mxu0 0.0
    %1587 = vmatpush2.msra.mxu0 %v1522
    %1588 = vmatprep.subr.mxu0 0.0
    %1589 = vmatpush2.msra.mxu0 %v1521
    %1590 = vmatprep.subr.mxu0 0.0
    %1591 = vmatpush2.msra.mxu0 %v1520
    %1592 = vmatprep.subr.mxu0 0.0
    %1593 = vmatpush2.msra.mxu0 %v1519
    %1594 = vmatprep.subr.mxu0 0.0
    %1595 = vmatpush2.msra.mxu0 %v1518
    %1596 = vmatprep.subr.mxu0 0.0
    %1597 = vmatpush2.msra.mxu0 %v1517
    %1598 = vmatprep.subr.mxu0 0.0
    %1599 = vmatpush2.msra.mxu0 %v1516
    %1600 = vmatprep.subr.mxu0 0.0
    %1601 = vmatpush2.msra.mxu0 %v1515
    %1602 = vmatprep.subr.mxu0 0.0
    %1603 = vmatpush2.msra.mxu0 %v1514
    %1604 = vmatprep.mubr.f32.mxu0 %v1538
    %1605 = vmatmul.mubr.f32.gmra.mxu0 %v1528
    %v1606 = vpop.f32.mrf.mxu0
    %v1607 = vadd.f32 %v1534, %v1606
    %v1608 = vpop.f32.mrf.mxu0
    %1609 = vdwg.mxu0
    %v1610 = vtanh.pop %v1607
    %1611 = vst [vmem:[#allocation2 + $0x13] sm:$0x1] %v1610
    %v1612 = vld [vmem:[%s1 + $0x310] sm:$0xff]
    %v1613 = vld [vmem:[%s1 + $0x318] sm:$0xff]
    %v1614 = vld [vmem:[%s1 + $0x320] sm:$0xff]
    %v1615 = vld [vmem:[%s1 + $0x328] sm:$0xff]
    %v1616 = vld [vmem:[%s1 + $0x330] sm:$0xff]
    %v1617 = vld [vmem:[%s1 + $0x338] sm:$0xff]
    %v1618 = vld [vmem:[%s1 + $0x340] sm:$0xff]
    %v1619 = vld [vmem:[%s1 + $0x348] sm:$0xff]
    %v1620 = vld [vmem:[%s1 + $0x350] sm:$0xff]
    %v1621 = vld [vmem:[%s1 + $0x358] sm:$0xff]
    %v1622 = vld [vmem:[%s1 + $0x360] sm:$0xff]
    %v1623 = vld [vmem:[%s1 + $0x368] sm:$0xff]
    %v1624 = vld [vmem:[%s1 + $0x370] sm:$0xff]
    %v1625 = vld [vmem:[%s1 + $0x378] sm:$0xff]
    %v1626 = vld [vmem:[%s1 + $0x380] sm:$0xff]
    %v1627 = vld [vmem:[%s1 + $0x388] sm:$0xff]
    %v1628 = vld [vmem:[%s1 + $0x390] sm:$0xff]
    %v1629 = vld [vmem:[%s1 + $0x398] sm:$0xff]
    %v1630 = vld [vmem:[%s1 + $0x3a0] sm:$0xff]
    %v1631 = vld [vmem:[%s1 + $0x3a8] sm:$0xff]
    %v1632 = vld [vmem:[%s1 + $0x3b0] sm:$0xff]
    %v1633 = vld [vmem:[%s1 + $0x3b8] sm:$0xff]
    %v1634 = vld [vmem:[%s1 + $0x3c0] sm:$0xff]
    %v1635 = vld [vmem:[%s1 + $0x3c8] sm:$0xff]
    %v1636 = vld [vmem:[%s1 + $0x3d0] sm:$0xff]
    %v1637 = vld [vmem:[#allocation2] sm:$0xff]
    %v1638 = vld [vmem:[#allocation2 + $0x8] sm:$0xff]
    %v1639 = vld [vmem:[#allocation2 + $0x10] sm:$0xff]
    %v1641 = vsel %vm42, %v1612, 0
    %v1644 = vsel %vm42, %v1613, 0
    %v1647 = vsel %vm42, %v1614, 0
    %v1650 = vsel %vm42, %v1615, 0
    %v1653 = vsel %vm42, %v1616, 0
    %v1656 = vsel %vm42, %v1617, 0
    %v1659 = vsel %vm42, %v1618, 0
    %v1662 = vsel %vm42, %v1619, 0
    %v1665 = vsel %vm42, %v1620, 0
    %v1668 = vsel %vm42, %v1621, 0
    %v1671 = vsel %vm42, %v1622, 0
    %v1674 = vsel %vm42, %v1623, 0
    %v1677 = vsel %vm42, %v1624, 0
    %v1680 = vsel %vm42, %v1625, 0
    %v1683 = vsel %vm42, %v1626, 0
    %v1686 = vsel %vm42, %v1627, 0
    %v1689 = vsel %vm42, %v1628, 0
    %v1692 = vsel %vm42, %v1629, 0
    %v1695 = vsel %vm42, %v1630, 0
    %v1698 = vsel %vm42, %v1631, 0
    %v1701 = vsel %vm42, %v1632, 0
    %v1704 = vsel %vm42, %v1633, 0
    %v1707 = vsel %vm42, %v1634, 0
    %v1710 = vsel %vm42, %v1635, 0
    %v1713 = vsel %vm42, %v1636, 0
    %1715 = vmatprep.subr.mxu0 0.0
    %1716 = vmatpush1.msra.mxu0 0.0
    %1717 = vmatprep.subr.mxu0 0.0
    %1718 = vmatpush1.msra.mxu0 0.0
    %1719 = vmatprep.subr.mxu0 0.0
    %1720 = vmatpush1.msra.mxu0 0.0
    %1721 = vmatprep.subr.mxu0 0.0
    %1722 = vmatpush1.msra.mxu0 0.0
    %1723 = vmatprep.subr.mxu0 0.0
    %1724 = vmatpush1.msra.mxu0 0.0
    %1725 = vmatprep.subr.mxu0 0.0
    %1726 = vmatpush1.msra.mxu0 0.0
    %1727 = vmatprep.subr.mxu0 0.0
    %1728 = vmatpush1.msra.mxu0 0.0
    %1729 = vmatprep.subr.mxu0 0.0
    %1730 = vmatpush1.msra.mxu0 0.0
    %1731 = vmatprep.subr.mxu0 0.0
    %1732 = vmatpush1.msra.mxu0 0.0
    %1733 = vmatprep.subr.mxu0 0.0
    %1734 = vmatpush1.msra.mxu0 0.0
    %1735 = vmatprep.subr.mxu0 0.0
    %1736 = vmatpush1.msra.mxu0 0.0
    %1737 = vmatprep.subr.mxu0 0.0
    %1738 = vmatpush1.msra.mxu0 0.0
    %1739 = vmatprep.subr.mxu0 0.0
    %1740 = vmatpush1.msra.mxu0 0.0
    %1741 = vmatprep.subr.mxu0 0.0
    %1742 = vmatpush1.msra.mxu0 %v1639
    %1743 = vmatprep.subr.mxu0 0.0
    %1744 = vmatpush1.msra.mxu0 %v1638
    %1745 = vmatprep.subr.mxu0 0.0
    %1746 = vmatpush1.msra.mxu0 %v1637
    %1747 = vmatprep.subr.mxu0 0.0
    %1748 = vmatpush2.msra.mxu0 0.0
    %1749 = vmatprep.subr.mxu0 0.0
    %1750 = vmatpush2.msra.mxu0 0.0
    %1751 = vmatprep.subr.mxu0 0.0
    %1752 = vmatpush2.msra.mxu0 0.0
    %1753 = vmatprep.subr.mxu0 0.0
    %1754 = vmatpush2.msra.mxu0 0.0
    %1755 = vmatprep.subr.mxu0 0.0
    %1756 = vmatpush2.msra.mxu0 0.0
    %1757 = vmatprep.subr.mxu0 0.0
    %1758 = vmatpush2.msra.mxu0 0.0
    %1759 = vmatprep.subr.mxu0 0.0
    %1760 = vmatpush2.msra.mxu0 0.0
    %1761 = vmatprep.subr.mxu0 0.0
    %1762 = vmatpush2.msra.mxu0 0.0
    %1763 = vmatprep.subr.mxu0 0.0
    %1764 = vmatpush2.msra.mxu0 0.0
    %1765 = vmatprep.subr.mxu0 0.0
    %1766 = vmatpush2.msra.mxu0 0.0
    %1767 = vmatprep.subr.mxu0 0.0
    %1768 = vmatpush2.msra.mxu0 0.0
    %1769 = vmatprep.subr.mxu0 0.0
    %1770 = vmatpush2.msra.mxu0 0.0
    %1771 = vmatprep.subr.mxu0 0.0
    %1772 = vmatpush2.msra.mxu0 0.0
    %1773 = vmatprep.subr.mxu0 0.0
    %1774 = vmatpush2.msra.mxu0 0.0
    %1775 = vmatprep.subr.mxu0 0.0
    %1776 = vmatpush2.msra.mxu0 0.0
    %1777 = vmatprep.subr.mxu0 0.0
    %1778 = vmatpush2.msra.mxu0 0.0
    %1779 = vmatprep.mubr.f32.mxu0 0.0
    %1780 = vmatmul.mubr.f32.gmra.mxu0 %v1641
    %v1781 = vpop.f32.mrf.mxu0
    %v1782 = vadd.f32 0.0, %v1781
    %v1783 = vpop.f32.mrf.mxu0
    %1784 = vmatprep.mubr.f32.mxu0 0.0
    %1785 = vmatmul.mubr.f32.gmra.mxu0 %v1644
    %v1786 = vpop.f32.mrf.mxu0
    %v1787 = vadd.f32 0.0, %v1786
    %v1788 = vpop.f32.mrf.mxu0
    %1789 = vmatprep.mubr.f32.mxu0 0.0
    %1790 = vmatmul.mubr.f32.gmra.mxu0 %v1647
    %v1791 = vpop.f32.mrf.mxu0
    %v1792 = vadd.f32 0.0, %v1791
    %v1793 = vpop.f32.mrf.mxu0
    %1794 = vmatprep.mubr.f32.mxu0 0.0
    %1795 = vmatmul.mubr.f32.gmra.mxu0 %v1650
    %v1796 = vpop.f32.mrf.mxu0
    %v1797 = vadd.f32 0.0, %v1796
    %v1798 = vpop.f32.mrf.mxu0
    %1799 = vmatprep.mubr.f32.mxu0 0.0
    %1800 = vmatmul.mubr.f32.gmra.mxu0 %v1653
    %v1801 = vpop.f32.mrf.mxu0
    %v1802 = vadd.f32 0.0, %v1801
    %v1803 = vpop.f32.mrf.mxu0
    %1804 = vmatprep.mubr.f32.mxu0 0.0
    %1805 = vmatmul.mubr.f32.gmra.mxu0 %v1656
    %v1806 = vpop.f32.mrf.mxu0
    %v1807 = vadd.f32 0.0, %v1806
    %v1808 = vpop.f32.mrf.mxu0
    %1809 = vmatprep.mubr.f32.mxu0 0.0
    %1810 = vmatmul.mubr.f32.gmra.mxu0 %v1659
    %v1811 = vpop.f32.mrf.mxu0
    %v1812 = vadd.f32 0.0, %v1811
    %v1813 = vpop.f32.mrf.mxu0
    %1814 = vmatprep.mubr.f32.mxu0 0.0
    %1815 = vmatmul.mubr.f32.gmra.mxu0 %v1662
    %v1816 = vpop.f32.mrf.mxu0
    %v1817 = vadd.f32 0.0, %v1816
    %v1818 = vpop.f32.mrf.mxu0
    %1819 = vmatprep.mubr.f32.mxu0 0.0
    %1820 = vmatmul.mubr.f32.gmra.mxu0 %v1665
    %v1821 = vpop.f32.mrf.mxu0
    %v1822 = vadd.f32 0.0, %v1821
    %v1823 = vpop.f32.mrf.mxu0
    %1824 = vmatprep.mubr.f32.mxu0 0.0
    %1825 = vmatmul.mubr.f32.gmra.mxu0 %v1668
    %v1826 = vpop.f32.mrf.mxu0
    %v1827 = vadd.f32 0.0, %v1826
    %v1828 = vpop.f32.mrf.mxu0
    %1829 = vmatprep.mubr.f32.mxu0 0.0
    %1830 = vmatmul.mubr.f32.gmra.mxu0 %v1671
    %v1831 = vpop.f32.mrf.mxu0
    %v1832 = vadd.f32 0.0, %v1831
    %v1833 = vpop.f32.mrf.mxu0
    %1834 = vmatprep.mubr.f32.mxu0 0.0
    %1835 = vmatmul.mubr.f32.gmra.mxu0 %v1674
    %v1836 = vpop.f32.mrf.mxu0
    %v1837 = vadd.f32 0.0, %v1836
    %v1838 = vpop.f32.mrf.mxu0
    %1839 = vmatprep.mubr.f32.mxu0 0.0
    %1840 = vmatmul.mubr.f32.gmra.mxu0 %v1677
    %v1841 = vpop.f32.mrf.mxu0
    %v1842 = vadd.f32 0.0, %v1841
    %v1843 = vpop.f32.mrf.mxu0
    %1844 = vmatprep.mubr.f32.mxu0 0.0
    %1845 = vmatmul.mubr.f32.gmra.mxu0 %v1680
    %v1846 = vpop.f32.mrf.mxu0
    %v1847 = vadd.f32 0.0, %v1846
    %v1848 = vpop.f32.mrf.mxu0
    %1849 = vmatprep.mubr.f32.mxu0 0.0
    %1850 = vmatmul.mubr.f32.gmra.mxu0 %v1683
    %v1851 = vpop.f32.mrf.mxu0
    %v1852 = vadd.f32 0.0, %v1851
    %v1853 = vpop.f32.mrf.mxu0
    %1854 = vmatprep.mubr.f32.mxu0 0.0
    %1855 = vmatmul.mubr.f32.gmra.mxu0 %v1686
    %v1856 = vpop.f32.mrf.mxu0
    %v1857 = vadd.f32 0.0, %v1856
    %v1858 = vpop.f32.mrf.mxu0
    %1859 = vmatprep.mubr.f32.mxu0 0.0
    %1860 = vmatmul.mubr.f32.gmra.mxu0 %v1689
    %v1861 = vpop.f32.mrf.mxu0
    %v1862 = vadd.f32 0.0, %v1861
    %v1863 = vpop.f32.mrf.mxu0
    %1864 = vmatprep.mubr.f32.mxu0 0.0
    %1865 = vmatmul.mubr.f32.gmra.mxu0 %v1692
    %v1866 = vpop.f32.mrf.mxu0
    %v1867 = vadd.f32 0.0, %v1866
    %v1868 = vpop.f32.mrf.mxu0
    %1869 = vmatprep.mubr.f32.mxu0 0.0
    %1870 = vmatmul.mubr.f32.gmra.mxu0 %v1695
    %v1871 = vpop.f32.mrf.mxu0
    %v1872 = vadd.f32 0.0, %v1871
    %v1873 = vpop.f32.mrf.mxu0
    %1874 = vmatprep.mubr.f32.mxu0 0.0
    %1875 = vmatmul.mubr.f32.gmra.mxu0 %v1698
    %v1876 = vpop.f32.mrf.mxu0
    %v1877 = vadd.f32 0.0, %v1876
    %v1878 = vpop.f32.mrf.mxu0
    %1879 = vmatprep.mubr.f32.mxu0 0.0
    %1880 = vmatmul.mubr.f32.gmra.mxu0 %v1701
    %v1881 = vpop.f32.mrf.mxu0
    %v1882 = vadd.f32 0.0, %v1881
    %v1883 = vpop.f32.mrf.mxu0
    %1884 = vmatprep.mubr.f32.mxu0 0.0
    %1885 = vmatmul.mubr.f32.gmra.mxu0 %v1704
    %v1886 = vpop.f32.mrf.mxu0
    %v1887 = vadd.f32 0.0, %v1886
    %v1888 = vpop.f32.mrf.mxu0
    %1889 = vmatprep.mubr.f32.mxu0 0.0
    %1890 = vmatmul.mubr.f32.gmra.mxu0 %v1707
    %v1891 = vpop.f32.mrf.mxu0
    %v1892 = vadd.f32 0.0, %v1891
    %v1893 = vpop.f32.mrf.mxu0
    %1894 = vmatprep.mubr.f32.mxu0 0.0
    %1895 = vmatmul.mubr.f32.gmra.mxu0 %v1710
    %v1896 = vpop.f32.mrf.mxu0
    %v1897 = vadd.f32 0.0, %v1896
    %v1898 = vpop.f32.mrf.mxu0
    %1899 = vmatprep.mubr.f32.mxu0 0.0
    %1900 = vmatmul.mubr.f32.gmra.mxu0 %v1713
    %v1901 = vpop.f32.mrf.mxu0
    %v1902 = vadd.f32 0.0, %v1901
    %v1903 = vpop.f32.mrf.mxu0
    %1904 = vdwg.mxu0
    %v1905 = vtanh.pop %v1782
    %v1906 = vtanh.pop %v1787
    %v1907 = vtanh.pop %v1792
    %v1908 = vtanh.pop %v1797
    %v1909 = vtanh.pop %v1802
    %v1910 = vtanh.pop %v1807
    %v1911 = vtanh.pop %v1812
    %v1912 = vtanh.pop %v1817
    %v1913 = vtanh.pop %v1822
    %v1914 = vtanh.pop %v1827
    %v1915 = vtanh.pop %v1832
    %v1916 = vtanh.pop %v1837
    %v1917 = vtanh.pop %v1842
    %v1918 = vtanh.pop %v1847
    %v1919 = vtanh.pop %v1852
    %v1920 = vtanh.pop %v1857
    %v1921 = vtanh.pop %v1862
    %v1922 = vtanh.pop %v1867
    %v1923 = vtanh.pop %v1872
    %v1924 = vtanh.pop %v1877
    %v1925 = vtanh.pop %v1882
    %v1926 = vtanh.pop %v1887
    %v1927 = vtanh.pop %v1892
    %v1928 = vtanh.pop %v1897
    %v1929 = vtanh.pop %v1902
    %v1930 = vld [vmem:[%s2 + $0x40] sm:$0xff]
    %v1931 = vld [vmem:[%s2 + $0x48] sm:$0xff]
    %v1932 = vld [vmem:[%s3 + $0x20] sm:$0xff]
    %1934 = vset.pattern.permute.xlu0 0
    %1935 = vperm.xlu0 %1934, %v1932
    %v1936 = vpop.permute.xlu0 %1935
    %v1939 = vsel %vm652, %v1931, 0
    %1941 = vmatprep.subr.mxu0 0.0
    %1942 = vmatpush1.msra.mxu0 %v1920
    %1943 = vmatprep.subr.mxu0 0.0
    %1944 = vmatpush1.msra.mxu0 %v1919
    %1945 = vmatprep.subr.mxu0 0.0
    %1946 = vmatpush1.msra.mxu0 %v1918
    %1947 = vmatprep.subr.mxu0 0.0
    %1948 = vmatpush1.msra.mxu0 %v1917
    %1949 = vmatprep.subr.mxu0 0.0
    %1950 = vmatpush1.msra.mxu0 %v1916
    %1951 = vmatprep.subr.mxu0 0.0
    %1952 = vmatpush1.msra.mxu0 %v1915
    %1953 = vmatprep.subr.mxu0 0.0
    %1954 = vmatpush1.msra.mxu0 %v1914
    %1955 = vmatprep.subr.mxu0 0.0
    %1956 = vmatpush1.msra.mxu0 %v1913
    %1957 = vmatprep.subr.mxu0 0.0
    %1958 = vmatpush1.msra.mxu0 %v1912
    %1959 = vmatprep.subr.mxu0 0.0
    %1960 = vmatpush1.msra.mxu0 %v1911
    %1961 = vmatprep.subr.mxu0 0.0
    %1962 = vmatpush1.msra.mxu0 %v1910
    %1963 = vmatprep.subr.mxu0 0.0
    %1964 = vmatpush1.msra.mxu0 %v1909
    %1965 = vmatprep.subr.mxu0 0.0
    %1966 = vmatpush1.msra.mxu0 %v1908
    %1967 = vmatprep.subr.mxu0 0.0
    %1968 = vmatpush1.msra.mxu0 %v1907
    %1969 = vmatprep.subr.mxu0 0.0
    %1970 = vmatpush1.msra.mxu0 %v1906
    %1971 = vmatprep.subr.mxu0 0.0
    %1972 = vmatpush1.msra.mxu0 %v1905
    %1973 = vmatprep.subr.mxu0 0.0
    %1974 = vmatpush2.msra.mxu0 0.0
    %1975 = vmatprep.subr.mxu0 0.0
    %1976 = vmatpush2.msra.mxu0 0.0
    %1977 = vmatprep.subr.mxu0 0.0
    %1978 = vmatpush2.msra.mxu0 0.0
    %1979 = vmatprep.subr.mxu0 0.0
    %1980 = vmatpush2.msra.mxu0 0.0
    %1981 = vmatprep.subr.mxu0 0.0
    %1982 = vmatpush2.msra.mxu0 0.0
    %1983 = vmatprep.subr.mxu0 0.0
    %1984 = vmatpush2.msra.mxu0 0.0
    %1985 = vmatprep.subr.mxu0 0.0
    %1986 = vmatpush2.msra.mxu0 0.0
    %1987 = vmatprep.subr.mxu0 0.0
    %1988 = vmatpush2.msra.mxu0 %v1929
    %1989 = vmatprep.subr.mxu0 0.0
    %1990 = vmatpush2.msra.mxu0 %v1928
    %1991 = vmatprep.subr.mxu0 0.0
    %1992 = vmatpush2.msra.mxu0 %v1927
    %1993 = vmatprep.subr.mxu0 0.0
    %1994 = vmatpush2.msra.mxu0 %v1926
    %1995 = vmatprep.subr.mxu0 0.0
    %1996 = vmatpush2.msra.mxu0 %v1925
    %1997 = vmatprep.subr.mxu0 0.0
    %1998 = vmatpush2.msra.mxu0 %v1924
    %1999 = vmatprep.subr.mxu0 0.0
    %2000 = vmatpush2.msra.mxu0 %v1923
    %2001 = vmatprep.subr.mxu0 0.0
    %2002 = vmatpush2.msra.mxu0 %v1922
    %2003 = vmatprep.subr.mxu0 0.0
    %2004 = vmatpush2.msra.mxu0 %v1921
    %2005 = vmatprep.mubr.f32.mxu0 %v1939
    %2006 = vmatmul.mubr.f32.gmra.mxu0 %v1930
    %v2007 = vpop.f32.mrf.mxu0
    %v2008 = vadd.f32 %v1936, %v2007
    %v2009 = vpop.f32.mrf.mxu0
    %2010 = vdwg.mxu0
    %v2011 = vtanh.pop %v2008
    %2012 = vst [vmem:[#allocation2 + $0x14] sm:$0x1] %v2011
    %v2013 = vld [vmem:[%s1 + $0x3d8] sm:$0xff]
    %v2014 = vld [vmem:[%s1 + $0x3e0] sm:$0xff]
    %v2015 = vld [vmem:[%s1 + $0x3e8] sm:$0xff]
    %v2016 = vld [vmem:[%s1 + $0x3f0] sm:$0xff]
    %v2017 = vld [vmem:[%s1 + $0x3f8] sm:$0xff]
    %v2018 = vld [vmem:[%s1 + $0x400] sm:$0xff]
    %v2019 = vld [vmem:[%s1 + $0x408] sm:$0xff]
    %v2020 = vld [vmem:[%s1 + $0x410] sm:$0xff]
    %v2021 = vld [vmem:[%s1 + $0x418] sm:$0xff]
    %v2022 = vld [vmem:[%s1 + $0x420] sm:$0xff]
    %v2023 = vld [vmem:[%s1 + $0x428] sm:$0xff]
    %v2024 = vld [vmem:[%s1 + $0x430] sm:$0xff]
    %v2025 = vld [vmem:[%s1 + $0x438] sm:$0xff]
    %v2026 = vld [vmem:[#allocation2] sm:$0xff]
    %v2027 = vld [vmem:[#allocation2 + $0x8] sm:$0xff]
    %v2028 = vld [vmem:[#allocation2 + $0x10] sm:$0xff]
    %v2030 = vsel %vm42, %v2013, 0
    %v2033 = vsel %vm42, %v2014, 0
    %v2036 = vsel %vm42, %v2015, 0
    %v2039 = vsel %vm42, %v2016, 0
    %v2042 = vsel %vm42, %v2017, 0
    %v2045 = vsel %vm42, %v2018, 0
    %v2048 = vsel %vm42, %v2019, 0
    %v2051 = vsel %vm42, %v2020, 0
    %v2054 = vsel %vm42, %v2021, 0
    %v2057 = vsel %vm42, %v2022, 0
    %v2060 = vsel %vm42, %v2023, 0
    %v2063 = vsel %vm42, %v2024, 0
    %v2066 = vsel %vm42, %v2025, 0
    %2068 = vmatprep.subr.mxu0 0.0
    %2069 = vmatpush1.msra.mxu0 0.0
    %2070 = vmatprep.subr.mxu0 0.0
    %2071 = vmatpush1.msra.mxu0 0.0
    %2072 = vmatprep.subr.mxu0 0.0
    %2073 = vmatpush1.msra.mxu0 0.0
    %2074 = vmatprep.subr.mxu0 0.0
    %2075 = vmatpush1.msra.mxu0 0.0
    %2076 = vmatprep.subr.mxu0 0.0
    %2077 = vmatpush1.msra.mxu0 0.0
    %2078 = vmatprep.subr.mxu0 0.0
    %2079 = vmatpush1.msra.mxu0 0.0
    %2080 = vmatprep.subr.mxu0 0.0
    %2081 = vmatpush1.msra.mxu0 0.0
    %2082 = vmatprep.subr.mxu0 0.0
    %2083 = vmatpush1.msra.mxu0 0.0
    %2084 = vmatprep.subr.mxu0 0.0
    %2085 = vmatpush1.msra.mxu0 0.0
    %2086 = vmatprep.subr.mxu0 0.0
    %2087 = vmatpush1.msra.mxu0 0.0
    %2088 = vmatprep.subr.mxu0 0.0
    %2089 = vmatpush1.msra.mxu0 0.0
    %2090 = vmatprep.subr.mxu0 0.0
    %2091 = vmatpush1.msra.mxu0 0.0
    %2092 = vmatprep.subr.mxu0 0.0
    %2093 = vmatpush1.msra.mxu0 0.0
    %2094 = vmatprep.subr.mxu0 0.0
    %2095 = vmatpush1.msra.mxu0 %v2028
    %2096 = vmatprep.subr.mxu0 0.0
    %2097 = vmatpush1.msra.mxu0 %v2027
    %2098 = vmatprep.subr.mxu0 0.0
    %2099 = vmatpush1.msra.mxu0 %v2026
    %2100 = vmatprep.subr.mxu0 0.0
    %2101 = vmatpush2.msra.mxu0 0.0
    %2102 = vmatprep.subr.mxu0 0.0
    %2103 = vmatpush2.msra.mxu0 0.0
    %2104 = vmatprep.subr.mxu0 0.0
    %2105 = vmatpush2.msra.mxu0 0.0
    %2106 = vmatprep.subr.mxu0 0.0
    %2107 = vmatpush2.msra.mxu0 0.0
    %2108 = vmatprep.subr.mxu0 0.0
    %2109 = vmatpush2.msra.mxu0 0.0
    %2110 = vmatprep.subr.mxu0 0.0
    %2111 = vmatpush2.msra.mxu0 0.0
    %2112 = vmatprep.subr.mxu0 0.0
    %2113 = vmatpush2.msra.mxu0 0.0
    %2114 = vmatprep.subr.mxu0 0.0
    %2115 = vmatpush2.msra.mxu0 0.0
    %2116 = vmatprep.subr.mxu0 0.0
    %2117 = vmatpush2.msra.mxu0 0.0
    %2118 = vmatprep.subr.mxu0 0.0
    %2119 = vmatpush2.msra.mxu0 0.0
    %2120 = vmatprep.subr.mxu0 0.0
    %2121 = vmatpush2.msra.mxu0 0.0
    %2122 = vmatprep.subr.mxu0 0.0
    %2123 = vmatpush2.msra.mxu0 0.0
    %2124 = vmatprep.subr.mxu0 0.0
    %2125 = vmatpush2.msra.mxu0 0.0
    %2126 = vmatprep.subr.mxu0 0.0
    %2127 = vmatpush2.msra.mxu0 0.0
    %2128 = vmatprep.subr.mxu0 0.0
    %2129 = vmatpush2.msra.mxu0 0.0
    %2130 = vmatprep.subr.mxu0 0.0
    %2131 = vmatpush2.msra.mxu0 0.0
    %2132 = vmatprep.mubr.f32.mxu0 0.0
    %2133 = vmatmul.mubr.f32.gmra.mxu0 %v2030
    %v2134 = vpop.f32.mrf.mxu0
    %v2135 = vadd.f32 0.0, %v2134
    %v2136 = vpop.f32.mrf.mxu0
    %2137 = vmatprep.mubr.f32.mxu0 0.0
    %2138 = vmatmul.mubr.f32.gmra.mxu0 %v2033
    %v2139 = vpop.f32.mrf.mxu0
    %v2140 = vadd.f32 0.0, %v2139
    %v2141 = vpop.f32.mrf.mxu0
    %2142 = vmatprep.mubr.f32.mxu0 0.0
    %2143 = vmatmul.mubr.f32.gmra.mxu0 %v2036
    %v2144 = vpop.f32.mrf.mxu0
    %v2145 = vadd.f32 0.0, %v2144
    %v2146 = vpop.f32.mrf.mxu0
    %2147 = vmatprep.mubr.f32.mxu0 0.0
    %2148 = vmatmul.mubr.f32.gmra.mxu0 %v2039
    %v2149 = vpop.f32.mrf.mxu0
    %v2150 = vadd.f32 0.0, %v2149
    %v2151 = vpop.f32.mrf.mxu0
    %2152 = vmatprep.mubr.f32.mxu0 0.0
    %2153 = vmatmul.mubr.f32.gmra.mxu0 %v2042
    %v2154 = vpop.f32.mrf.mxu0
    %v2155 = vadd.f32 0.0, %v2154
    %v2156 = vpop.f32.mrf.mxu0
    %2157 = vmatprep.mubr.f32.mxu0 0.0
    %2158 = vmatmul.mubr.f32.gmra.mxu0 %v2045
    %v2159 = vpop.f32.mrf.mxu0
    %v2160 = vadd.f32 0.0, %v2159
    %v2161 = vpop.f32.mrf.mxu0
    %2162 = vmatprep.mubr.f32.mxu0 0.0
    %2163 = vmatmul.mubr.f32.gmra.mxu0 %v2048
    %v2164 = vpop.f32.mrf.mxu0
    %v2165 = vadd.f32 0.0, %v2164
    %v2166 = vpop.f32.mrf.mxu0
    %2167 = vmatprep.mubr.f32.mxu0 0.0
    %2168 = vmatmul.mubr.f32.gmra.mxu0 %v2051
    %v2169 = vpop.f32.mrf.mxu0
    %v2170 = vadd.f32 0.0, %v2169
    %v2171 = vpop.f32.mrf.mxu0
    %2172 = vmatprep.mubr.f32.mxu0 0.0
    %2173 = vmatmul.mubr.f32.gmra.mxu0 %v2054
    %v2174 = vpop.f32.mrf.mxu0
    %v2175 = vadd.f32 0.0, %v2174
    %v2176 = vpop.f32.mrf.mxu0
    %2177 = vmatprep.mubr.f32.mxu0 0.0
    %2178 = vmatmul.mubr.f32.gmra.mxu0 %v2057
    %v2179 = vpop.f32.mrf.mxu0
    %v2180 = vadd.f32 0.0, %v2179
    %v2181 = vpop.f32.mrf.mxu0
    %2182 = vmatprep.mubr.f32.mxu0 0.0
    %2183 = vmatmul.mubr.f32.gmra.mxu0 %v2060
    %v2184 = vpop.f32.mrf.mxu0
    %v2185 = vadd.f32 0.0, %v2184
    %v2186 = vpop.f32.mrf.mxu0
    %2187 = vmatprep.mubr.f32.mxu0 0.0
    %2188 = vmatmul.mubr.f32.gmra.mxu0 %v2063
    %v2189 = vpop.f32.mrf.mxu0
    %v2190 = vadd.f32 0.0, %v2189
    %v2191 = vpop.f32.mrf.mxu0
    %2192 = vmatprep.mubr.f32.mxu0 0.0
    %2193 = vmatmul.mubr.f32.gmra.mxu0 %v2066
    %v2194 = vpop.f32.mrf.mxu0
    %v2195 = vadd.f32 0.0, %v2194
    %v2196 = vpop.f32.mrf.mxu0
    %2197 = vdwg.mxu0
    %v2198 = vtanh.pop %v2135
    %v2199 = vtanh.pop %v2140
    %v2200 = vtanh.pop %v2145
    %v2201 = vtanh.pop %v2150
    %v2202 = vtanh.pop %v2155
    %v2203 = vtanh.pop %v2160
    %v2204 = vtanh.pop %v2165
    %v2205 = vtanh.pop %v2170
    %v2206 = vtanh.pop %v2175
    %v2207 = vtanh.pop %v2180
    %v2208 = vtanh.pop %v2185
    %v2209 = vtanh.pop %v2190
    %v2210 = vtanh.pop %v2195
    %v2211 = vld [vmem:[%s2 + $0x50] sm:$0xff]
    %v2212 = vld [vmem:[%s3 + $0x28] sm:$0xff]
    %2214 = vset.pattern.permute.xlu0 0
    %2215 = vperm.xlu0 %2214, %v2212
    %v2216 = vpop.permute.xlu0 %2215
    %vm2218 = vcmask 850944
    %v2220 = vsel %vm2218, %v2211, 0
    %2222 = vmatprep.subr.mxu0 0.0
    %2223 = vmatpush1.msra.mxu0 0.0
    %2224 = vmatprep.subr.mxu0 0.0
    %2225 = vmatpush1.msra.mxu0 0.0
    %2226 = vmatprep.subr.mxu0 0.0
    %2227 = vmatpush1.msra.mxu0 0.0
    %2228 = vmatprep.subr.mxu0 0.0
    %2229 = vmatpush1.msra.mxu0 %v2210
    %2230 = vmatprep.subr.mxu0 0.0
    %2231 = vmatpush1.msra.mxu0 %v2209
    %2232 = vmatprep.subr.mxu0 0.0
    %2233 = vmatpush1.msra.mxu0 %v2208
    %2234 = vmatprep.subr.mxu0 0.0
    %2235 = vmatpush1.msra.mxu0 %v2207
    %2236 = vmatprep.subr.mxu0 0.0
    %2237 = vmatpush1.msra.mxu0 %v2206
    %2238 = vmatprep.subr.mxu0 0.0
    %2239 = vmatpush1.msra.mxu0 %v2205
    %2240 = vmatprep.subr.mxu0 0.0
    %2241 = vmatpush1.msra.mxu0 %v2204
    %2242 = vmatprep.subr.mxu0 0.0
    %2243 = vmatpush1.msra.mxu0 %v2203
    %2244 = vmatprep.subr.mxu0 0.0
    %2245 = vmatpush1.msra.mxu0 %v2202
    %2246 = vmatprep.subr.mxu0 0.0
    %2247 = vmatpush1.msra.mxu0 %v2201
    %2248 = vmatprep.subr.mxu0 0.0
    %2249 = vmatpush1.msra.mxu0 %v2200
    %2250 = vmatprep.subr.mxu0 0.0
    %2251 = vmatpush1.msra.mxu0 %v2199
    %2252 = vmatprep.subr.mxu0 0.0
    %2253 = vmatpush1.msra.mxu0 %v2198
    %2254 = vmatprep.subr.mxu0 0.0
    %2255 = vmatpush2.msra.mxu0 0.0
    %2256 = vmatprep.subr.mxu0 0.0
    %2257 = vmatpush2.msra.mxu0 0.0
    %2258 = vmatprep.subr.mxu0 0.0
    %2259 = vmatpush2.msra.mxu0 0.0
    %2260 = vmatprep.subr.mxu0 0.0
    %2261 = vmatpush2.msra.mxu0 0.0
    %2262 = vmatprep.subr.mxu0 0.0
    %2263 = vmatpush2.msra.mxu0 0.0
    %2264 = vmatprep.subr.mxu0 0.0
    %2265 = vmatpush2.msra.mxu0 0.0
    %2266 = vmatprep.subr.mxu0 0.0
    %2267 = vmatpush2.msra.mxu0 0.0
    %2268 = vmatprep.subr.mxu0 0.0
    %2269 = vmatpush2.msra.mxu0 0.0
    %2270 = vmatprep.subr.mxu0 0.0
    %2271 = vmatpush2.msra.mxu0 0.0
    %2272 = vmatprep.subr.mxu0 0.0
    %2273 = vmatpush2.msra.mxu0 0.0
    %2274 = vmatprep.subr.mxu0 0.0
    %2275 = vmatpush2.msra.mxu0 0.0
    %2276 = vmatprep.subr.mxu0 0.0
    %2277 = vmatpush2.msra.mxu0 0.0
    %2278 = vmatprep.subr.mxu0 0.0
    %2279 = vmatpush2.msra.mxu0 0.0
    %2280 = vmatprep.subr.mxu0 0.0
    %2281 = vmatpush2.msra.mxu0 0.0
    %2282 = vmatprep.subr.mxu0 0.0
    %2283 = vmatpush2.msra.mxu0 0.0
    %2284 = vmatprep.subr.mxu0 0.0
    %2285 = vmatpush2.msra.mxu0 0.0
    %2286 = vmatprep.mubr.f32.mxu0 0.0
    %2287 = vmatmul.mubr.f32.gmra.mxu0 %v2220
    %v2288 = vpop.f32.mrf.mxu0
    %v2289 = vadd.f32 %v2216, %v2288
    %v2290 = vpop.f32.mrf.mxu0
    %2291 = vdwg.mxu0
    %2292 = vst [vmem:[#allocation3] sm:$0x1f] %v2289
    // Predicated region
    $region18: #{tpu_custom_call.1} parent=1 // pred_check
      _
    $region19: #{tpu_custom_call.1} parent=1 // pred_check_branch
      %2294 = sbr.rel (0) target = $region21
    $region20: #{tpu_custom_call.1} parent=1 // pred_region
      %s2296 = ssub.s32 128, 128
      %2297 = vsyncadd [#allocation4], %s2296
      %s2299 = sshll.u32 [#allocation3], 4
      %s2300 = int_to_ptr.vmem [resolvable:$true] %s2299
      %2302 = dma.vmem_to_hbm [thread:$0]  %s2300, 128, %s4, [#allocation4]
    $region21: #{tpu_custom_call.1} parent=1 // pred_fallthru
      _
    // Predicated region
    $region22: #{tpu_custom_call.1} parent=1 // pred_check
      _
    $region23: #{tpu_custom_call.1} parent=1 // pred_check_branch
      %2304 = sbr.rel (0) target = $region25
    $region24: #{tpu_custom_call.1} parent=1 // pred_region
      %2305 = dma.done [#allocation4], 128
    $region25: #{tpu_custom_call.1} parent=1 // pred_fallthru
      _
    %2306 = vsyncpa [#allocation4], 1

</llo_original>
